<compile_context>
chip_gen: v6e
topology: v6e:2x2x1
jax: 0.10.0
libtpu: 0.0.40
codegen_flags: <defaults>
</compile_context>

<pallas_src>
import functools

import jax
import jax.numpy as jnp
from jax import lax
from jax.experimental import pallas as pl
from jax.experimental.pallas import tpu as pltpu


_MASK_VALUE = -1e30       # finite sentinel: exp underflows to exactly 0, no NaN on fully-masked rows
_DEF_VMEM_CAP = 64 << 20  # conservative fallback = v7x per-TensorCore VMEM


def _round_up(x, m):
    return ((x + m - 1) // m) * m


def _tile_bytes(rows, cols, itemsize):
    # VMEM tiles are padded to (sublane=8, lane=128) granularity.
    return _round_up(max(rows, 1), 8) * _round_up(max(cols, 1), 128) * itemsize


def _vmem_capacity_bytes():
    try:
        return int(pltpu.get_tpu_info().vmem_capacity_bytes)
    except Exception:
        return _DEF_VMEM_CAP


def _footprint_bytes(tq, d, dv, lk, itemsize, attn_itemsize, mask_itemsize, kv_buffers):
    """Estimated per-kernel VMEM footprint for a given query tile size."""
    fp = 2 * _tile_bytes(tq, d, itemsize)              # q block (double buffered)
    fp += kv_buffers * _tile_bytes(lk, d, itemsize)     # K block
    fp += kv_buffers * _tile_bytes(lk, dv, itemsize)    # V block
    fp += 2 * _tile_bytes(tq, dv, itemsize)             # out block
    if attn_itemsize:
        fp += 2 * _tile_bytes(tq, lk, attn_itemsize)    # attn out block
    if mask_itemsize:
        fp += 2 * _tile_bytes(tq, lk, mask_itemsize)    # mask block
    fp += 3 * _tile_bytes(tq, lk, 4)                    # f32 scores / exp / probs
    fp += 2 << 20                                       # compiler scratch slack
    return fp


def _pick_tq(lq, footprint_fn, budget):
    """Largest query tile that fits the VMEM budget.

    Prefers 512/256 (keeps the 256x256 MXU of v6e/v7x full) and only drops
    lower when VMEM forces it.  Lq <= 512 uses one full-length tile (a block
    equal to the full dim satisfies the (8,128) rule for any Lq).
    """
    if lq <= 512:
        return lq
    for cand in (512, 256, 128, 64, 32):
        if footprint_fn(cand) <= budget:
            return cand
    return 32


def _sdpa_kernel(*refs, inv_temperature, has_mask, has_attn, dot_precision):
    i = 0
    q_ref = refs[i]; i += 1
    k_ref = refs[i]; i += 1
    v_ref = refs[i]; i += 1
    mask_ref = None
    if has_mask:
        mask_ref = refs[i]; i += 1
    out_ref = refs[i]; i += 1
    attn_ref = refs[i] if has_attn else None

    q = q_ref[0]          # (TQ, D)
    k = k_ref[0]          # (Lk, D)
    v = v_ref[0]          # (Lk, Dv)

    # s = q @ k^T, contracting the last dims of both operands (no in-kernel
    # relayout / XLU transpose of K).  Accumulate in f32 on the MXU.
    s = lax.dot_general(
        q, k, dimension_numbers=(((1,), (1,)), ((), ())),
        precision=dot_precision, preferred_element_type=jnp.float32)
    # Scale the f32 scores (same op order as the reference; avoids rounding
    # 1/temperature into low-precision q).
    s = s * inv_temperature

    if has_mask:
        m = mask_ref[0]   # (TQ, Lk); True / nonzero => masked
        masked = m if m.dtype == jnp.bool_ else (m != 0)
        s = jnp.where(masked, _MASK_VALUE, s)

    # Row softmax over the key axis (dim=2 of the full attn tensor).
    s_max = jnp.max(s, axis=-1, keepdims=True)
    e = jnp.exp(s - s_max)
    denom = jnp.sum(e, axis=-1, keepdims=True)
    # Exact reciprocal of the (TQ, 1) denominator: negligible cost, and the
    # approximate EUP reciprocal is not accurate enough for f32 tolerances.
    p = e * (1.0 / denom)

    p_v = p.astype(v_ref.dtype)   # single cast, reused for attn when dtypes match
    out = lax.dot_general(
        p_v, v, dimension_numbers=(((1,), (0,)), ((), ())),
        precision=dot_precision, preferred_element_type=jnp.float32)
    out_ref[0] = out.astype(out_ref.dtype)

    if has_attn:
        attn_ref[0] = p_v if attn_ref.dtype == p_v.dtype else p.astype(attn_ref.dtype)


def scaled_dot_product_attention(q, k, v, temperature, mask=None, *,
                                 return_attn=True, attn_dtype=None):
    """Pallas TPU implementation of ScaledDotProductAttention.forward (eval mode).

    Returns (output, attn) like the PyTorch module when return_attn=True, else
    just output (skipping the B*Lq*Lk attn writeback, the dominant HBM stream).
    """
    B, Lq, D = q.shape
    Bk, Lk, Dk = k.shape
    Bv, Lkv, Dv = v.shape
    assert B == Bk == Bv and D == Dk and Lk == Lkv

    inv_temperature = 1.0 / float(temperature)
    itemsize = jnp.dtype(q.dtype).itemsize
    attn_dtype = jnp.dtype(q.dtype if attn_dtype is None else attn_dtype)
    attn_itemsize = attn_dtype.itemsize if return_attn else 0

    have_mask = mask is not None
    if have_mask:
        mask = jnp.asarray(mask)
        # bool / int8 masks go straight to the kernel (no extra HBM pass);
        # only wider dtypes are narrowed to int8.
        if mask.dtype.itemsize > 1:
            mask = (mask != 0).astype(jnp.int8)
        mask_itemsize = mask.dtype.itemsize
    else:
        mask_itemsize = 0

    cap = _vmem_capacity_bytes()
    budget = max(min(cap, 128 << 20) - (16 << 20), 24 << 20)
    kv_buffers = 1 if Lq > 512 else 2   # K/V single-buffered once the q axis is tiled
    footprint_fn = functools.partial(
        _footprint_bytes, d=D, dv=Dv, lk=Lk, itemsize=itemsize,
        attn_itemsize=attn_itemsize, mask_itemsize=mask_itemsize,
        kv_buffers=kv_buffers)
    tq = _pick_tq(Lq, footprint_fn, budget)
    n_q_tiles = pl.cdiv(Lq, tq)

    # Always set an explicit scoped-VMEM limit (v5e's default scope is 16 MiB);
    # never exceed the chip's physical VMEM (64 MiB per TensorCore on v7x).
    needed = footprint_fn(tq)
    vmem_limit = int(min(max(2 * needed, 32 << 20), cap - (8 << 20)))

    # Megacore: give each TensorCore a different batch when possible so K/V is
    # not fetched twice; shard the q-tile axis only when B is too small.
    dims = ("parallel", "arbitrary") if B >= 2 else ("arbitrary", "parallel")
    compiler_params = pltpu.CompilerParams(
        dimension_semantics=dims, vmem_limit_bytes=vmem_limit)

    q_spec = pl.BlockSpec((1, tq, D), lambda b, i: (b, i, 0))
    if n_q_tiles > 1:
        # K/V blocks only change when b changes; single-buffer them to free VMEM.
        k_spec = pl.BlockSpec((1, Lk, D), lambda b, i: (b, 0, 0),
                              pipeline_mode=pl.Buffered(1))
        v_spec = pl.BlockSpec((1, Lk, Dv), lambda b, i: (b, 0, 0),
                              pipeline_mode=pl.Buffered(1))
    else:
        k_spec = pl.BlockSpec((1, Lk, D), lambda b, i: (b, 0, 0))
        v_spec = pl.BlockSpec((1, Lk, Dv), lambda b, i: (b, 0, 0))

    in_specs = [q_spec, k_spec, v_spec]
    args = [q, k, v]
    if have_mask:
        in_specs.append(pl.BlockSpec((1, tq, Lk), lambda b, i: (b, i, 0)))
        args.append(mask)

    out_spec = pl.BlockSpec((1, tq, Dv), lambda b, i: (b, i, 0))
    if return_attn:
        out_shape = (jax.ShapeDtypeStruct((B, Lq, Dv), q.dtype),
                     jax.ShapeDtypeStruct((B, Lq, Lk), attn_dtype))
        out_specs = (out_spec, pl.BlockSpec((1, tq, Lk), lambda b, i: (b, i, 0)))
    else:
        out_shape = jax.ShapeDtypeStruct((B, Lq, Dv), q.dtype)
        out_specs = out_spec

    def run(dot_precision, call_args):
        kernel = functools.partial(
            _sdpa_kernel, inv_temperature=inv_temperature, has_mask=have_mask,
            has_attn=return_attn, dot_precision=dot_precision)
        return pl.pallas_call(
            kernel,
            out_shape=out_shape,
            grid_spec=pltpu.PrefetchScalarGridSpec(
                num_scalar_prefetch=0,
                grid=(B, n_q_tiles),
                in_specs=in_specs,
                out_specs=out_specs,
            ),
            compiler_params=compiler_params,
        )(*call_args)

    try:
        # HIGHEST keeps f32 QK^T / PV at full f32 precision (no-op for bf16).
        result = run(lax.Precision.HIGHEST, tuple(args))
    except Exception:
        # Fallback for lowerings that reject an explicit matmul precision or a
        # bool-typed mask block: default precision, int8 mask.
        if have_mask and args[-1].dtype != jnp.int8:
            args[-1] = (args[-1] != 0).astype(jnp.int8)
        result = run(None, tuple(args))

    return result


def _reference(q, k, v, temperature, mask=None):
    hi = lax.Precision.HIGHEST
    attn = jnp.einsum("bqd,bkd->bqk", q, k, precision=hi) / temperature
    if mask is not None:
        attn = jnp.where(mask, -jnp.inf, attn)
    attn = jax.nn.softmax(attn, axis=2)
    out = jnp.einsum("bqk,bkd->bqd", attn, v, precision=hi)
    return out, attn


if __name__ == "__main__":
    key = jax.random.PRNGKey(0)
    kq, kk, kv, km = jax.random.split(key, 4)

    B, Lq, Lk, D, Dv = 2, 8, 8, 32, 32
    temperature = float(D) ** 0.5  # typical choice: sqrt(d_k)

    q = jax.random.normal(kq, (B, Lq, D), dtype=jnp.float32)
    k = jax.random.normal(kk, (B, Lk, D), dtype=jnp.float32)
    v = jax.random.normal(kv, (B, Lk, Dv), dtype=jnp.float32)

    # --- no-mask path ---
    out, attn = scaled_dot_product_attention(q, k, v, temperature, mask=None)
    out, attn = jax.block_until_ready((out, attn))
    out_ref, attn_ref = _reference(q, k, v, temperature, mask=None)
    assert out.shape == (B, Lq, Dv) and attn.shape == (B, Lq, Lk)
    assert jnp.allclose(out, out_ref, atol=1e-4, rtol=1e-4), \
        float(jnp.max(jnp.abs(out - out_ref)))
    assert jnp.allclose(attn, attn_ref, atol=1e-4, rtol=1e-4), \
        float(jnp.max(jnp.abs(attn - attn_ref)))

    # --- masked path (no row fully masked, so the finite sentinel matches -inf) ---
    mask = jax.random.bernoulli(km, p=0.3, shape=(B, Lq, Lk))
    mask = mask.at[:, :, 0].set(False)
    out_m, attn_m = scaled_dot_product_attention(q, k, v, temperature, mask=mask)
    out_m, attn_m = jax.block_until_ready((out_m, attn_m))
    out_mref, attn_mref = _reference(q, k, v, temperature, mask=mask)
    assert jnp.allclose(out_m, out_mref, atol=1e-4, rtol=1e-4), \
        float(jnp.max(jnp.abs(out_m - out_mref)))
    assert jnp.allclose(attn_m, attn_mref, atol=1e-4, rtol=1e-4), \
        float(jnp.max(jnp.abs(attn_m - attn_mref)))

    # --- output-only variant (skips the B*Lq*Lk attn writeback) ---
    out_only = scaled_dot_product_attention(q, k, v, temperature, mask=None,
                                            return_attn=False)
    out_only = jax.block_until_ready(out_only)
    assert jnp.allclose(out_only, out_ref, atol=1e-4, rtol=1e-4)

    print("KERNEL_OK")
</pallas_src>

<mosaic_0001>
module attributes {stable_mosaic.version = 11 : i64} {
  func.func @_sdpa_kernel(%arg0: i32, %arg1: i32, %arg2: memref<1x8x32xf32, #tpu.memory_space<vmem>>, %arg3: memref<1x8x32xf32, #tpu.memory_space<vmem>>, %arg4: memref<1x8x32xf32, #tpu.memory_space<vmem>>, %arg5: memref<1x8x32xf32, #tpu.memory_space<vmem>>, %arg6: memref<1x8x8xf32, #tpu.memory_space<vmem>>) attributes {dimension_semantics = [#tpu.dimension_semantics<parallel>, #tpu.dimension_semantics<arbitrary>], iteration_bounds = array<i64: 2, 1>, scalar_prefetch = 0 : i64, scratch_operands = 0 : i64, tpu.core_type = #tpu.core_type<tc>, window_params = [{transform_indices = @transform_0, window_bounds = array<i64: 1, 8, 32>}, {transform_indices = @transform_1, window_bounds = array<i64: 1, 8, 32>}, {transform_indices = @transform_2, window_bounds = array<i64: 1, 8, 32>}, {transform_indices = @transform_3, window_bounds = array<i64: 1, 8, 32>}, {transform_indices = @transform_4, window_bounds = array<i64: 1, 8, 8>}]} {
    %c0 = arith.constant 0 : index
    %c0_0 = arith.constant 0 : index
    %c0_1 = arith.constant 0 : index
    %0 = vector.load %arg2[%c0, %c0_0, %c0_1] : memref<1x8x32xf32, #tpu.memory_space<vmem>>, vector<1x8x32xf32>
    %1 = vector.shape_cast %0 : vector<1x8x32xf32> to vector<8x32xf32>
    %c0_2 = arith.constant 0 : index
    %c0_3 = arith.constant 0 : index
    %c0_4 = arith.constant 0 : index
    %2 = vector.load %arg3[%c0_2, %c0_3, %c0_4] : memref<1x8x32xf32, #tpu.memory_space<vmem>>, vector<1x8x32xf32>
    %3 = vector.shape_cast %2 : vector<1x8x32xf32> to vector<8x32xf32>
    %c0_5 = arith.constant 0 : index
    %c0_6 = arith.constant 0 : index
    %c0_7 = arith.constant 0 : index
    %4 = vector.load %arg4[%c0_5, %c0_6, %c0_7] : memref<1x8x32xf32, #tpu.memory_space<vmem>>, vector<1x8x32xf32>
    %5 = vector.shape_cast %4 : vector<1x8x32xf32> to vector<8x32xf32>
    %cst = arith.constant dense<0.000000e+00> : vector<8x8xf32>
    %6 = tpu.matmul %1, %3, %cst {dimension_numbers = #tpu.dot_dimension_numbers<[1], [1], [0], [0], [0, 0, 1, 0], [], []>, precision = #tpu.contract_precision<fp32>} : vector<8x32xf32>, vector<8x32xf32>, vector<8x8xf32> -> vector<8x8xf32>
    %cst_8 = arith.constant 0.176776692 : f32
    %7 = vector.broadcast %cst_8 : f32 to vector<8x8xf32>
    %8 = arith.mulf %6, %7 : vector<8x8xf32>
    %cst_9 = arith.constant dense<0xFF800000> : vector<8xf32>
    %9 = vector.multi_reduction <maximumf>, %8, %cst_9 [1] : vector<8x8xf32> to vector<8xf32>
    %10 = vector.shape_cast %9 : vector<8xf32> to vector<8x1xf32>
    %11 = vector.broadcast %10 : vector<8x1xf32> to vector<8x8xf32>
    %12 = arith.subf %8, %11 : vector<8x8xf32>
    %13 = math.exp %12 : vector<8x8xf32>
    %cst_10 = arith.constant dense<0.000000e+00> : vector<8xf32>
    %14 = vector.multi_reduction <add>, %13, %cst_10 [1] : vector<8x8xf32> to vector<8xf32>
    %15 = vector.shape_cast %14 : vector<8xf32> to vector<8x1xf32>
    %cst_11 = arith.constant 1.000000e+00 : f32
    %16 = vector.broadcast %cst_11 : f32 to vector<8x1xf32>
    %17 = arith.divf %16, %15 : vector<8x1xf32>
    %18 = vector.broadcast %17 : vector<8x1xf32> to vector<8x8xf32>
    %19 = arith.mulf %13, %18 : vector<8x8xf32>
    %cst_12 = arith.constant dense<0.000000e+00> : vector<8x32xf32>
    %20 = tpu.matmul %19, %5, %cst_12 {dimension_numbers = #tpu.dot_dimension_numbers<[1], [0], [0], [1], [0, 0, 1, 1], [], []>, precision = #tpu.contract_precision<fp32>} : vector<8x8xf32>, vector<8x32xf32>, vector<8x32xf32> -> vector<8x32xf32>
    %c0_13 = arith.constant 0 : index
    %c0_14 = arith.constant 0 : index
    %c0_15 = arith.constant 0 : index
    %21 = vector.load %arg5[%c0_13, %c0_14, %c0_15] : memref<1x8x32xf32, #tpu.memory_space<vmem>>, vector<1x8x32xf32>
    %22 = vector.shape_cast %21 : vector<1x8x32xf32> to vector<8x32xf32>
    %23 = vector.shape_cast %20 : vector<8x32xf32> to vector<1x8x32xf32>
    tpu.vector_store %arg5[%c0_13, %c0_14, %c0_15], %23 {strides = array<i32>} : memref<1x8x32xf32, #tpu.memory_space<vmem>>, vector<1x8x32xf32>,
    %c0_16 = arith.constant 0 : index
    %c0_17 = arith.constant 0 : index
    %c0_18 = arith.constant 0 : index
    %24 = vector.load %arg6[%c0_16, %c0_17, %c0_18] : memref<1x8x8xf32, #tpu.memory_space<vmem>>, vector<1x8x8xf32>
    %25 = vector.shape_cast %24 : vector<1x8x8xf32> to vector<8x8xf32>
    %26 = vector.shape_cast %19 : vector<8x8xf32> to vector<1x8x8xf32>
    tpu.vector_store %arg6[%c0_16, %c0_17, %c0_18], %26 {strides = array<i32>} : memref<1x8x8xf32, #tpu.memory_space<vmem>>, vector<1x8x8xf32>,
    return
  }
  func.func @transform_0(%arg0: i32, %arg1: i32) -> (i32, i32, i32) {
    %c0_i32 = arith.constant 0 : i32
    %c0_i32_0 = arith.constant 0 : i32
    return %arg0, %arg1, %c0_i32 : i32, i32, i32
  }
  func.func @transform_1(%arg0: i32, %arg1: i32) -> (i32, i32, i32) {
    %c0_i32 = arith.constant 0 : i32
    %c0_i32_0 = arith.constant 0 : i32
    %c0_i32_1 = arith.constant 0 : i32
    return %arg0, %c0_i32, %c0_i32_0 : i32, i32, i32
  }
  func.func @transform_2(%arg0: i32, %arg1: i32) -> (i32, i32, i32) {
    %c0_i32 = arith.constant 0 : i32
    %c0_i32_0 = arith.constant 0 : i32
    %c0_i32_1 = arith.constant 0 : i32
    return %arg0, %c0_i32, %c0_i32_0 : i32, i32, i32
  }
  func.func @transform_3(%arg0: i32, %arg1: i32) -> (i32, i32, i32) {
    %c0_i32 = arith.constant 0 : i32
    %c0_i32_0 = arith.constant 0 : i32
    return %arg0, %arg1, %c0_i32 : i32, i32, i32
  }
  func.func @transform_4(%arg0: i32, %arg1: i32) -> (i32, i32, i32) {
    %c0_i32 = arith.constant 0 : i32
    %c0_i32_0 = arith.constant 0 : i32
    return %arg0, %arg1, %c0_i32 : i32, i32, i32
  }
}

module attributes {stable_mosaic.version = 11 : i64} {
  func.func @_sdpa_kernel(%arg0: i32, %arg1: i32, %arg2: memref<1x8x32xf32, #tpu.memory_space<vmem>>, %arg3: memref<1x8x32xf32, #tpu.memory_space<vmem>>, %arg4: memref<1x8x32xf32, #tpu.memory_space<vmem>>, %arg5: memref<1x8x32xf32, #tpu.memory_space<vmem>>, %arg6: memref<1x8x8xf32, #tpu.memory_space<vmem>>) attributes {dimension_semantics = [#tpu.dimension_semantics<parallel>, #tpu.dimension_semantics<arbitrary>], iteration_bounds = array<i64: 2, 1>, scalar_prefetch = 0 : i64, scratch_operands = 0 : i64, tpu.core_type = #tpu.core_type<tc>, window_params = [{transform_indices = @transform_0, window_bounds = array<i64: 1, 8, 32>}, {transform_indices = @transform_1, window_bounds = array<i64: 1, 8, 32>}, {transform_indices = @transform_2, window_bounds = array<i64: 1, 8, 32>}, {transform_indices = @transform_3, window_bounds = array<i64: 1, 8, 32>}, {transform_indices = @transform_4, window_bounds = array<i64: 1, 8, 8>}]} {
    %c0 = arith.constant 0 : index
    %c0_0 = arith.constant 0 : index
    %c0_1 = arith.constant 0 : index
    %0 = vector.load %arg2[%c0, %c0_0, %c0_1] : memref<1x8x32xf32, #tpu.memory_space<vmem>>, vector<1x8x32xf32>
    %1 = vector.shape_cast %0 : vector<1x8x32xf32> to vector<8x32xf32>
    %c0_2 = arith.constant 0 : index
    %c0_3 = arith.constant 0 : index
    %c0_4 = arith.constant 0 : index
    %2 = vector.load %arg3[%c0_2, %c0_3, %c0_4] : memref<1x8x32xf32, #tpu.memory_space<vmem>>, vector<1x8x32xf32>
    %3 = vector.shape_cast %2 : vector<1x8x32xf32> to vector<8x32xf32>
    %c0_5 = arith.constant 0 : index
    %c0_6 = arith.constant 0 : index
    %c0_7 = arith.constant 0 : index
    %4 = vector.load %arg4[%c0_5, %c0_6, %c0_7] : memref<1x8x32xf32, #tpu.memory_space<vmem>>, vector<1x8x32xf32>
    %5 = vector.shape_cast %4 : vector<1x8x32xf32> to vector<8x32xf32>
    %cst = arith.constant dense<0.000000e+00> : vector<8x8xf32>
    %6 = tpu.matmul %1, %3, %cst {dimension_numbers = #tpu.dot_dimension_numbers<[1], [1], [0], [0], [0, 0, 1, 0], [], []>} : vector<8x32xf32>, vector<8x32xf32>, vector<8x8xf32> -> vector<8x8xf32>
    %cst_8 = arith.constant 0.176776692 : f32
    %7 = vector.broadcast %cst_8 : f32 to vector<8x8xf32>
    %8 = arith.mulf %6, %7 : vector<8x8xf32>
    %cst_9 = arith.constant dense<0xFF800000> : vector<8xf32>
    %9 = vector.multi_reduction <maximumf>, %8, %cst_9 [1] : vector<8x8xf32> to vector<8xf32>
    %10 = vector.shape_cast %9 : vector<8xf32> to vector<8x1xf32>
    %11 = vector.broadcast %10 : vector<8x1xf32> to vector<8x8xf32>
    %12 = arith.subf %8, %11 : vector<8x8xf32>
    %13 = math.exp %12 : vector<8x8xf32>
    %cst_10 = arith.constant dense<0.000000e+00> : vector<8xf32>
    %14 = vector.multi_reduction <add>, %13, %cst_10 [1] : vector<8x8xf32> to vector<8xf32>
    %15 = vector.shape_cast %14 : vector<8xf32> to vector<8x1xf32>
    %cst_11 = arith.constant 1.000000e+00 : f32
    %16 = vector.broadcast %cst_11 : f32 to vector<8x1xf32>
    %17 = arith.divf %16, %15 : vector<8x1xf32>
    %18 = vector.broadcast %17 : vector<8x1xf32> to vector<8x8xf32>
    %19 = arith.mulf %13, %18 : vector<8x8xf32>
    %cst_12 = arith.constant dense<0.000000e+00> : vector<8x32xf32>
    %20 = tpu.matmul %19, %5, %cst_12 {dimension_numbers = #tpu.dot_dimension_numbers<[1], [0], [0], [1], [0, 0, 1, 1], [], []>} : vector<8x8xf32>, vector<8x32xf32>, vector<8x32xf32> -> vector<8x32xf32>
    %c0_13 = arith.constant 0 : index
    %c0_14 = arith.constant 0 : index
    %c0_15 = arith.constant 0 : index
    %21 = vector.load %arg5[%c0_13, %c0_14, %c0_15] : memref<1x8x32xf32, #tpu.memory_space<vmem>>, vector<1x8x32xf32>
    %22 = vector.shape_cast %21 : vector<1x8x32xf32> to vector<8x32xf32>
    %23 = vector.shape_cast %20 : vector<8x32xf32> to vector<1x8x32xf32>
    tpu.vector_store %arg5[%c0_13, %c0_14, %c0_15], %23 {strides = array<i32>} : memref<1x8x32xf32, #tpu.memory_space<vmem>>, vector<1x8x32xf32>,
    %c0_16 = arith.constant 0 : index
    %c0_17 = arith.constant 0 : index
    %c0_18 = arith.constant 0 : index
    %24 = vector.load %arg6[%c0_16, %c0_17, %c0_18] : memref<1x8x8xf32, #tpu.memory_space<vmem>>, vector<1x8x8xf32>
    %25 = vector.shape_cast %24 : vector<1x8x8xf32> to vector<8x8xf32>
    %26 = vector.shape_cast %19 : vector<8x8xf32> to vector<1x8x8xf32>
    tpu.vector_store %arg6[%c0_16, %c0_17, %c0_18], %26 {strides = array<i32>} : memref<1x8x8xf32, #tpu.memory_space<vmem>>, vector<1x8x8xf32>,
    return
  }
  func.func @transform_0(%arg0: i32, %arg1: i32) -> (i32, i32, i32) {
    %c0_i32 = arith.constant 0 : i32
    %c0_i32_0 = arith.constant 0 : i32
    return %arg0, %arg1, %c0_i32 : i32, i32, i32
  }
  func.func @transform_1(%arg0: i32, %arg1: i32) -> (i32, i32, i32) {
    %c0_i32 = arith.constant 0 : i32
    %c0_i32_0 = arith.constant 0 : i32
    %c0_i32_1 = arith.constant 0 : i32
    return %arg0, %c0_i32, %c0_i32_0 : i32, i32, i32
  }
  func.func @transform_2(%arg0: i32, %arg1: i32) -> (i32, i32, i32) {
    %c0_i32 = arith.constant 0 : i32
    %c0_i32_0 = arith.constant 0 : i32
    %c0_i32_1 = arith.constant 0 : i32
    return %arg0, %c0_i32, %c0_i32_0 : i32, i32, i32
  }
  func.func @transform_3(%arg0: i32, %arg1: i32) -> (i32, i32, i32) {
    %c0_i32 = arith.constant 0 : i32
    %c0_i32_0 = arith.constant 0 : i32
    return %arg0, %arg1, %c0_i32 : i32, i32, i32
  }
  func.func @transform_4(%arg0: i32, %arg1: i32) -> (i32, i32, i32) {
    %c0_i32 = arith.constant 0 : i32
    %c0_i32_0 = arith.constant 0 : i32
    return %arg0, %arg1, %c0_i32 : i32, i32, i32
  }
}

</mosaic_0001>

<llo_original>
// kernel: tpu_custom_call.1
$region0: #{tpu_custom_call.1}
  #allocation0 [shape = 'u32[]', space=smem, size = 0x4, offset = 0x4, fixed_abs, tag = 'smem constant byte address 0x4 - core index']
  #allocation1 [shape = 'u32[144,128]{1,0:T(1,128)}', space=vmem, size = 0x12000, scoped, tag = 'internal scratch']
  %s0 = inlined_call_operand.hbm [shape: f32[2,8,32], index: 0, kind: input, shape index: {}]
  %s1 = inlined_call_operand.hbm [shape: f32[2,8,32], index: 1, kind: input, shape index: {}]
  %s2 = inlined_call_operand.hbm [shape: f32[2,8,32], index: 2, kind: input, shape index: {}]
  %s3 = inlined_call_operand.hbm [shape: f32[2,8,32], index: 3, kind: output, shape index: {0}]
  %s4 = inlined_call_operand.hbm [shape: f32[2,8,8], index: 4, kind: output, shape index: {1}]
  %5 = xla_tuple %s3, %s4
  %s6 = sld [smem:[#allocation0]]
  $region65: #{tpu_custom_call.1} parent=0
    _
  %s8 = ssub.s32 1, %s6
  %s9 = scalar_select 0, %s8, %s6
  $region1: #{tpu_custom_call.1} parent=0
    #allocation2 [shape = 'u8[8192]{0}', space=vmem, size = 0x2000, scoped, tag = 'input window, operand 0']
    #allocation3 [shape = 's32[2]{0}', space=sflag, size = 0x8, scoped, tag = 'scoped memory for tpu_custom_call.1']
    #allocation4 [shape = 's32[2]{0}', space=sflag, size = 0x8, scoped, tag = 'scoped memory for tpu_custom_call.1']
    #allocation5 [shape = 'u8[8192]{0}', space=vmem, size = 0x2000, scoped, tag = 'input window, operand 1']
    #allocation6 [shape = 's32[2]{0}', space=sflag, size = 0x8, scoped, tag = 'scoped memory for tpu_custom_call.1']
    #allocation7 [shape = 'u8[8192]{0}', space=vmem, size = 0x2000, scoped, tag = 'input window, operand 2']
    #allocation8 [shape = 'u8[8192]{0}', space=vmem, size = 0x2000, scoped, tag = 'output window, operand 0']
    #allocation9 [shape = 'u8[8192]{0}', space=vmem, size = 0x2000, scoped, tag = 'output window, operand 1']
    #allocation10 [shape = 's32[2]{0}', space=sflag, size = 0x8, scoped, tag = 'scoped memory for tpu_custom_call.1']
    %10 = vsyncpa [#allocation3], 0
    %s11 = scalar_lea.sflag [#allocation3], 1
    %12 = vsyncpa %s11, 0
    %13 = vsyncpa [#allocation6], 0
    %s14 = scalar_lea.sflag [#allocation6], 1
    %15 = vsyncpa %s14, 0
    %16 = vsyncpa [#allocation4], 0
    %s17 = scalar_lea.sflag [#allocation4], 1
    %18 = vsyncpa %s17, 0
    %19 = vsyncpa [#allocation10], 0
    %s20 = scalar_lea.sflag [#allocation10], 1
    %21 = vsyncpa %s20, 0
    loop: start=0, step=1, limit=4
    $region2: #{tpu_custom_call.1} parent=1 // loop_pre_header
      _
    $region3: #{tpu_custom_call.1} parent=1 // loop_header
      %s23 = sphi 0, %s27
      %p24 = scmp.ge.s32.totalorder %s23, 4
      %s30 = sphi 0, %s42
      %s31 = sphi 0, %s38
      %s32 = sphi 0, %s30
      %s33 = sphi 0, %s31
      %s34 = sphi 0, %s32
      %s35 = sphi 0, %s33
      %s47 = sphi 0, %s49
      %s50 = sphi 0, %s47
      %s51 = sphi 0, %s50
      %s67 = sphi 0, %s51
      %s73 = sphi 0, %s75
      %s76 = sphi 0, %s73
      %s77 = sphi 0, %s76
      %s93 = sphi 0, %s77
      %s99 = sphi 0, %s101
      %s102 = sphi 0, %s99
      %s103 = sphi 0, %s102
      %s119 = sphi 0, %s103
      %s127 = sphi 0, %s129
      %s130 = sphi 0, %s127
      %s131 = sphi 0, %s130
      %s147 = sphi 0, %s131
      %s155 = sphi 0, %s157
      %s158 = sphi 0, %s155
      %s159 = sphi 0, %s158
      %s175 = sphi 0, %s159
    $region4: #{tpu_custom_call.1} parent=1 // loop_header_branch
      %26 = sbr.rel (%p24) target = $region8
    $region5: #{tpu_custom_call.1} parent=1 // loop_body
      %s28 = ssub.s32 %s23, 1
      %s29 = ssub.s32 %s23, 2
      %s36 = sadd.s32 1, %s31
      %p37 = scmp.ge.s32.totalorder %s36, 1
      %s38 = scalar_select %p37, 0, %s36
      %s39 = sadd.s32 1, %s30
      %s40 = scalar_select %p37, %s39, %s30
      %p41 = scmp.ge.s32.totalorder %s40, 2
      %s42 = scalar_select %p41, 0, %s40
      %s43 = ssub.s32 %s30, %s42
      %s44 = ssub.s32 %s31, %s38
      %s45 = sor.u32 %s43, %s44
      %p46 = scmp.eq.s32.totalorder %s45, 0
      %s48 = sadd.s32 %s47, 1
      %s49 = scalar_select %p46, %s47, %s48
      %p52 = pneg %p46
      %p53 = scmp.eq.s32.totalorder %s23, 1
      %p54 = por %p52, %p53
      %p55 = scmp.ne.s32.totalorder %s47, %s50
      %p56 = scmp.eq.s32.totalorder %s23, 0
      %p57 = por %p55, %p56
      %p58 = scmp.ne.s32.totalorder %s47, %s50
      %p59 = scmp.eq.s32.totalorder %s28, 1
      %p60 = por %p58, %p59
      %p61 = scmp.ne.s32.totalorder %s50, %s51
      %p62 = scmp.eq.s32.totalorder %s28, 0
      %p63 = por %p61, %p62
      %p64 = scmp.ne.s32.totalorder %s50, %s51
      %p65 = scmp.eq.s32.totalorder %s29, 1
      %p66 = por %p64, %p65
      %p68 = scmp.ne.s32.totalorder %s51, %s67
      %p69 = scmp.eq.s32.totalorder %s29, 0
      %p70 = por %p68, %p69
      %s71 = ssub.s32 %s30, %s42
      %p72 = scmp.eq.s32.totalorder %s71, 0
      %s74 = sadd.s32 %s73, 1
      %s75 = scalar_select %p72, %s73, %s74
      %p78 = pneg %p72
      %p79 = scmp.eq.s32.totalorder %s23, 1
      %p80 = por %p78, %p79
      %p81 = scmp.ne.s32.totalorder %s73, %s76
      %p82 = scmp.eq.s32.totalorder %s23, 0
      %p83 = por %p81, %p82
      %p84 = scmp.ne.s32.totalorder %s73, %s76
      %p85 = scmp.eq.s32.totalorder %s28, 1
      %p86 = por %p84, %p85
      %p87 = scmp.ne.s32.totalorder %s76, %s77
      %p88 = scmp.eq.s32.totalorder %s28, 0
      %p89 = por %p87, %p88
      %p90 = scmp.ne.s32.totalorder %s76, %s77
      %p91 = scmp.eq.s32.totalorder %s29, 1
      %p92 = por %p90, %p91
      %p94 = scmp.ne.s32.totalorder %s77, %s93
      %p95 = scmp.eq.s32.totalorder %s29, 0
      %p96 = por %p94, %p95
      %s97 = ssub.s32 %s30, %s42
      %p98 = scmp.eq.s32.totalorder %s97, 0
      %s100 = sadd.s32 %s99, 1
      %s101 = scalar_select %p98, %s99, %s100
      %p104 = pneg %p98
      %p105 = scmp.eq.s32.totalorder %s23, 1
      %p106 = por %p104, %p105
      %p107 = scmp.ne.s32.totalorder %s99, %s102
      %p108 = scmp.eq.s32.totalorder %s23, 0
      %p109 = por %p107, %p108
      %p110 = scmp.ne.s32.totalorder %s99, %s102
      %p111 = scmp.eq.s32.totalorder %s28, 1
      %p112 = por %p110, %p111
      %p113 = scmp.ne.s32.totalorder %s102, %s103
      %p114 = scmp.eq.s32.totalorder %s28, 0
      %p115 = por %p113, %p114
      %p116 = scmp.ne.s32.totalorder %s102, %s103
      %p117 = scmp.eq.s32.totalorder %s29, 1
      %p118 = por %p116, %p117
      %p120 = scmp.ne.s32.totalorder %s103, %s119
      %p121 = scmp.eq.s32.totalorder %s29, 0
      %p122 = por %p120, %p121
      %s123 = ssub.s32 %s30, %s42
      %s124 = ssub.s32 %s31, %s38
      %s125 = sor.u32 %s123, %s124
      %p126 = scmp.eq.s32.totalorder %s125, 0
      %s128 = sadd.s32 %s127, 1
      %s129 = scalar_select %p126, %s127, %s128
      %p132 = pneg %p126
      %p133 = scmp.eq.s32.totalorder %s23, 1
      %p134 = por %p132, %p133
      %p135 = scmp.ne.s32.totalorder %s127, %s130
      %p136 = scmp.eq.s32.totalorder %s23, 0
      %p137 = por %p135, %p136
      %p138 = scmp.ne.s32.totalorder %s127, %s130
      %p139 = scmp.eq.s32.totalorder %s28, 1
      %p140 = por %p138, %p139
      %p141 = scmp.ne.s32.totalorder %s130, %s131
      %p142 = scmp.eq.s32.totalorder %s28, 0
      %p143 = por %p141, %p142
      %p144 = scmp.ne.s32.totalorder %s130, %s131
      %p145 = scmp.eq.s32.totalorder %s29, 1
      %p146 = por %p144, %p145
      %p148 = scmp.ne.s32.totalorder %s131, %s147
      %p149 = scmp.eq.s32.totalorder %s29, 0
      %p150 = por %p148, %p149
      %s151 = ssub.s32 %s30, %s42
      %s152 = ssub.s32 %s31, %s38
      %s153 = sor.u32 %s151, %s152
      %p154 = scmp.eq.s32.totalorder %s153, 0
      %s156 = sadd.s32 %s155, 1
      %s157 = scalar_select %p154, %s155, %s156
      %p160 = pneg %p154
      %p161 = scmp.eq.s32.totalorder %s23, 1
      %p162 = por %p160, %p161
      %p163 = scmp.ne.s32.totalorder %s155, %s158
      %p164 = scmp.eq.s32.totalorder %s23, 0
      %p165 = por %p163, %p164
      %p166 = scmp.ne.s32.totalorder %s155, %s158
      %p167 = scmp.eq.s32.totalorder %s28, 1
      %p168 = por %p166, %p167
      %p169 = scmp.ne.s32.totalorder %s158, %s159
      %p170 = scmp.eq.s32.totalorder %s28, 0
      %p171 = por %p169, %p170
      %p172 = scmp.ne.s32.totalorder %s158, %s159
      %p173 = scmp.eq.s32.totalorder %s29, 1
      %p174 = por %p172, %p173
      %p176 = scmp.ne.s32.totalorder %s159, %s175
      %p177 = scmp.eq.s32.totalorder %s29, 0
      %p178 = por %p176, %p177
      %p179 = scmp.le.s32.totalorder 1, %s23
      %p180 = scmp.lt.s32.totalorder %s23, 3
      %p181 = pnand %p179, %p180
      %p182 = pneg %p181
      // Predicated region
      $region9: #{tpu_custom_call.1} parent=5 // pred_check
        _
      $region10: #{tpu_custom_call.1} parent=5 // pred_check_branch
        %184 = sbr.rel (%p181) target = $region12
      $region11: #{tpu_custom_call.1} parent=5 // pred_region
        %s185 = ssub.s32 %s23, 1
      $region12: #{tpu_custom_call.1} parent=5 // pred_fallthru
        _
      %p186 = scmp.lt.s32.totalorder %s23, 2
      // Predicated region
      $region13: #{tpu_custom_call.1} parent=5 // pred_check
        %p187 = pneg %p186
      $region14: #{tpu_custom_call.1} parent=5 // pred_check_branch
        %189 = sbr.rel (%p187) target = $region16
      $region15: #{tpu_custom_call.1} parent=5 // pred_region
        // Predicated region
        $region17: #{tpu_custom_call.1} parent=15 // pred_check
          %p190 = pneg %p57
        $region18: #{tpu_custom_call.1} parent=15 // pred_check_branch
          %192 = sbr.rel (%p190) target = $region20
        $region19: #{tpu_custom_call.1} parent=15 // pred_region
          %s193 = sand.u32 %s47, 1
          %s194 = scalar_lea.sflag [#allocation3], %s193
          %s195 = sand.u32 %s47, 1
          %s196 = smul.addr %s195, 8
          %s197 = scalar_lea.vmem [#allocation2], %s196
          %s199 = ssub.s32 128, 128
          %200 = vsyncadd %s194, %s199
          %s201 = sadd.s32 %s31, %s30
          %s202 = smul.addr %s201, 128
          %s203 = scalar_lea.hbm %s0, %s202
          %s205 = sshll.u32 %s197, 4
          %s206 = int_to_ptr.vmem [resolvable:$true] %s205
          %208 = dma.hbm_to_vmem [thread:$0]  %s203, 128, %s206, %s194
        $region20: #{tpu_custom_call.1} parent=15 // pred_fallthru
          _
        // Predicated region
        $region21: #{tpu_custom_call.1} parent=15 // pred_check
          %p209 = pneg %p83
        $region22: #{tpu_custom_call.1} parent=15 // pred_check_branch
          %211 = sbr.rel (%p209) target = $region24
        $region23: #{tpu_custom_call.1} parent=15 // pred_region
          %s212 = sand.u32 %s23, 1
          %s213 = scalar_lea.sflag [#allocation6], %s212
          %s214 = sand.u32 %s73, 1
          %s215 = smul.addr %s214, 8
          %s216 = scalar_lea.vmem [#allocation5], %s215
          %s218 = ssub.s32 128, 128
          %219 = vsyncadd %s213, %s218
          %s220 = smul.addr %s30, 128
          %s221 = scalar_lea.hbm %s1, %s220
          %s223 = sshll.u32 %s216, 4
          %s224 = int_to_ptr.vmem [resolvable:$true] %s223
          %226 = dma.hbm_to_vmem [thread:$0]  %s221, 128, %s224, %s213
        $region24: #{tpu_custom_call.1} parent=15 // pred_fallthru
          _
        // Predicated region
        $region25: #{tpu_custom_call.1} parent=15 // pred_check
          %p227 = pneg %p109
        $region26: #{tpu_custom_call.1} parent=15 // pred_check_branch
          %229 = sbr.rel (%p227) target = $region28
        $region27: #{tpu_custom_call.1} parent=15 // pred_region
          %s230 = sand.u32 %s23, 1
          %s231 = scalar_lea.sflag [#allocation6], %s230
          %s232 = sand.u32 %s99, 1
          %s233 = smul.addr %s232, 8
          %s234 = scalar_lea.vmem [#allocation7], %s233
          %s236 = ssub.s32 128, 128
          %237 = vsyncadd %s231, %s236
          %s238 = smul.addr %s30, 128
          %s239 = scalar_lea.hbm %s2, %s238
          %s241 = sshll.u32 %s234, 4
          %s242 = int_to_ptr.vmem [resolvable:$true] %s241
          %244 = dma.hbm_to_vmem [thread:$0]  %s239, 128, %s242, %s231
        $region28: #{tpu_custom_call.1} parent=15 // pred_fallthru
          _
      $region16: #{tpu_custom_call.1} parent=5 // pred_fallthru
        _
      %p245 = scmp.le.s32.totalorder 1, %s23
      %p246 = scmp.lt.s32.totalorder %s23, 3
      %p247 = pnand %p245, %p246
      %p248 = pneg %p247
      // Predicated region
      $region29: #{tpu_custom_call.1} parent=5 // pred_check
        _
      $region30: #{tpu_custom_call.1} parent=5 // pred_check_branch
        %250 = sbr.rel (%p247) target = $region32
      $region31: #{tpu_custom_call.1} parent=5 // pred_region
        %s251 = ssub.s32 %s23, 1
        %s252 = sand.u32 %s50, 1
        %s253 = scalar_lea.sflag [#allocation3], %s252
        %s254 = sand.u32 %s50, 1
        %s255 = smul.addr %s254, 8
        %s256 = scalar_lea.vmem [#allocation2], %s255
        // Predicated region
        $region33: #{tpu_custom_call.1} parent=31 // pred_check
          %p257 = pneg %p63
        $region34: #{tpu_custom_call.1} parent=31 // pred_check_branch
          %259 = sbr.rel (%p257) target = $region36
        $region35: #{tpu_custom_call.1} parent=31 // pred_region
          %260 = dma.done %s253, 128
        $region36: #{tpu_custom_call.1} parent=31 // pred_fallthru
          _
        %s261 = sand.u32 %s28, 1
        %s262 = scalar_lea.sflag [#allocation6], %s261
        %s263 = sand.u32 %s76, 1
        %s264 = smul.addr %s263, 8
        %s265 = scalar_lea.vmem [#allocation5], %s264
        // Predicated region
        $region37: #{tpu_custom_call.1} parent=31 // pred_check
          %p266 = pneg %p89
        $region38: #{tpu_custom_call.1} parent=31 // pred_check_branch
          %268 = sbr.rel (%p266) target = $region40
        $region39: #{tpu_custom_call.1} parent=31 // pred_region
          %269 = dma.done %s262, 128
        $region40: #{tpu_custom_call.1} parent=31 // pred_fallthru
          _
        %s270 = sand.u32 %s28, 1
        %s271 = scalar_lea.sflag [#allocation6], %s270
        %s272 = sand.u32 %s102, 1
        %s273 = smul.addr %s272, 8
        %s274 = scalar_lea.vmem [#allocation7], %s273
        // Predicated region
        $region41: #{tpu_custom_call.1} parent=31 // pred_check
          %p275 = pneg %p115
        $region42: #{tpu_custom_call.1} parent=31 // pred_check_branch
          %277 = sbr.rel (%p275) target = $region44
        $region43: #{tpu_custom_call.1} parent=31 // pred_region
          %278 = dma.done %s271, 128
        $region44: #{tpu_custom_call.1} parent=31 // pred_fallthru
          _
        %s279 = sand.u32 %s50, 1
        %s280 = scalar_lea.sflag [#allocation3], %s279
        %s281 = sand.u32 %s50, 1
        %s282 = smul.addr %s281, 8
        %s283 = scalar_lea.vmem [#allocation2], %s282
        %p284 = pneg %p63
        %p285 = pneg %p60
        %s286 = sand.u32 %s28, 1
        %s287 = scalar_lea.sflag [#allocation6], %s286
        %s288 = sand.u32 %s76, 1
        %s289 = smul.addr %s288, 8
        %s290 = scalar_lea.vmem [#allocation5], %s289
        %p291 = pneg %p89
        %p292 = pneg %p86
        %s293 = sand.u32 %s28, 1
        %s294 = scalar_lea.sflag [#allocation6], %s293
        %s295 = sand.u32 %s102, 1
        %s296 = smul.addr %s295, 8
        %s297 = scalar_lea.vmem [#allocation7], %s296
        %p298 = pneg %p115
        %p299 = pneg %p112
        %p300 = pneg %p143
        %p301 = pneg %p140
        %s302 = sand.u32 %s130, 1
        %s303 = scalar_lea.sflag [#allocation4], %s302
        %s304 = sand.u32 %s130, 1
        %s305 = smul.addr %s304, 8
        %s306 = scalar_lea.vmem [#allocation8], %s305
        %p307 = pneg %p171
        %p308 = pneg %p168
        %s309 = sand.u32 %s158, 1
        %s310 = scalar_lea.sflag [#allocation10], %s309
        %s311 = sand.u32 %s158, 1
        %s312 = smul.addr %s311, 8
        %s313 = scalar_lea.vmem [#allocation9], %s312
        %v314 = vld [vmem:[%s256] sm:$0xff]
        %v315 = vld [vmem:[%s265] sm:$0xff]
        %v316 = vld [vmem:[%s274] sm:$0xff]
        %vm317 = vcmask 261120
        %v319 = vsel %vm317, %v314, 0
        %v322 = vsel %vm317, %v315, 0
        %324 = vmatprep.subr.mxu0 0.0
        %325 = vmatpush1.xpose.msra.mxu0 0.0
        %326 = vmatprep.subr.mxu0 0.0
        %327 = vmatpush1.xpose.msra.mxu0 0.0
        %328 = vmatprep.subr.mxu0 0.0
        %329 = vmatpush1.xpose.msra.mxu0 0.0
        %330 = vmatprep.subr.mxu0 0.0
        %331 = vmatpush1.xpose.msra.mxu0 0.0
        %332 = vmatprep.subr.mxu0 0.0
        %333 = vmatpush1.xpose.msra.mxu0 0.0
        %334 = vmatprep.subr.mxu0 0.0
        %335 = vmatpush1.xpose.msra.mxu0 0.0
        %336 = vmatprep.subr.mxu0 0.0
        %337 = vmatpush1.xpose.msra.mxu0 0.0
        %338 = vmatprep.subr.mxu0 0.0
        %339 = vmatpush1.xpose.msra.mxu0 0.0
        %340 = vmatprep.subr.mxu0 0.0
        %341 = vmatpush1.xpose.msra.mxu0 0.0
        %342 = vmatprep.subr.mxu0 0.0
        %343 = vmatpush1.xpose.msra.mxu0 0.0
        %344 = vmatprep.subr.mxu0 0.0
        %345 = vmatpush1.xpose.msra.mxu0 0.0
        %346 = vmatprep.subr.mxu0 0.0
        %347 = vmatpush1.xpose.msra.mxu0 0.0
        %348 = vmatprep.subr.mxu0 0.0
        %349 = vmatpush1.xpose.msra.mxu0 0.0
        %350 = vmatprep.subr.mxu0 0.0
        %351 = vmatpush1.xpose.msra.mxu0 0.0
        %352 = vmatprep.subr.mxu0 0.0
        %353 = vmatpush1.xpose.msra.mxu0 0.0
        %354 = vmatprep.subr.mxu0 0.0
        %v355 = vand.u32 %v322, 4294901760
        %356 = vmatpush1.xpose.msra.mxu0 %v355
        %357 = vmatprep.subr.mxu0 0.0
        %358 = vmatpush2.xpose.msra.mxu0 0.0
        %359 = vmatprep.subr.mxu0 0.0
        %360 = vmatpush2.xpose.msra.mxu0 0.0
        %361 = vmatprep.subr.mxu0 0.0
        %362 = vmatpush2.xpose.msra.mxu0 0.0
        %363 = vmatprep.subr.mxu0 0.0
        %364 = vmatpush2.xpose.msra.mxu0 0.0
        %365 = vmatprep.subr.mxu0 0.0
        %366 = vmatpush2.xpose.msra.mxu0 0.0
        %367 = vmatprep.subr.mxu0 0.0
        %368 = vmatpush2.xpose.msra.mxu0 0.0
        %369 = vmatprep.subr.mxu0 0.0
        %370 = vmatpush2.xpose.msra.mxu0 0.0
        %371 = vmatprep.subr.mxu0 0.0
        %372 = vmatpush2.xpose.msra.mxu0 0.0
        %373 = vmatprep.subr.mxu0 0.0
        %374 = vmatpush2.xpose.msra.mxu0 0.0
        %375 = vmatprep.subr.mxu0 0.0
        %376 = vmatpush2.xpose.msra.mxu0 0.0
        %377 = vmatprep.subr.mxu0 0.0
        %378 = vmatpush2.xpose.msra.mxu0 0.0
        %379 = vmatprep.subr.mxu0 0.0
        %380 = vmatpush2.xpose.msra.mxu0 0.0
        %381 = vmatprep.subr.mxu0 0.0
        %382 = vmatpush2.xpose.msra.mxu0 0.0
        %383 = vmatprep.subr.mxu0 0.0
        %384 = vmatpush2.xpose.msra.mxu0 0.0
        %385 = vmatprep.subr.mxu0 0.0
        %386 = vmatpush2.xpose.msra.mxu0 0.0
        %387 = vmatprep.subr.mxu0 0.0
        %388 = vmatpush2.xpose.msra.mxu0 0.0
        %389 = vmatprep.mubr.f32.mxu0 0.0
        %v390 = vand.u32 %v319, 4294901760
        %v391 = vsub.f32 %v319, %v390
        %v392 = vand.u32 %v391, 4294901760
        %v393 = vsub.f32 %v391, %v392
        %v394 = vand.u32 %v393, 4294901760
        %395 = vmatmul.mubr.f32.gmra.mxu0 %v394
        %v396 = vpop.f32.mrf.mxu0
        %v397 = vadd.f32 0.0, %v396
        %v398 = vpop.f32.mrf.mxu0
        %399 = vdwg.mxu0
        %400 = vmatprep.subr.mxu0 0.0
        %401 = vmatpush1.xpose.msra.mxu0 0.0
        %402 = vmatprep.subr.mxu0 0.0
        %403 = vmatpush1.xpose.msra.mxu0 0.0
        %404 = vmatprep.subr.mxu0 0.0
        %405 = vmatpush1.xpose.msra.mxu0 0.0
        %406 = vmatprep.subr.mxu0 0.0
        %407 = vmatpush1.xpose.msra.mxu0 0.0
        %408 = vmatprep.subr.mxu0 0.0
        %409 = vmatpush1.xpose.msra.mxu0 0.0
        %410 = vmatprep.subr.mxu0 0.0
        %411 = vmatpush1.xpose.msra.mxu0 0.0
        %412 = vmatprep.subr.mxu0 0.0
        %413 = vmatpush1.xpose.msra.mxu0 0.0
        %414 = vmatprep.subr.mxu0 0.0
        %415 = vmatpush1.xpose.msra.mxu0 0.0
        %416 = vmatprep.subr.mxu0 0.0
        %417 = vmatpush1.xpose.msra.mxu0 0.0
        %418 = vmatprep.subr.mxu0 0.0
        %419 = vmatpush1.xpose.msra.mxu0 0.0
        %420 = vmatprep.subr.mxu0 0.0
        %421 = vmatpush1.xpose.msra.mxu0 0.0
        %422 = vmatprep.subr.mxu0 0.0
        %423 = vmatpush1.xpose.msra.mxu0 0.0
        %424 = vmatprep.subr.mxu0 0.0
        %425 = vmatpush1.xpose.msra.mxu0 0.0
        %426 = vmatprep.subr.mxu0 0.0
        %427 = vmatpush1.xpose.msra.mxu0 0.0
        %428 = vmatprep.subr.mxu0 0.0
        %429 = vmatpush1.xpose.msra.mxu0 0.0
        %430 = vmatprep.subr.mxu0 0.0
        %v431 = vand.u32 %v322, 4294901760
        %v432 = vsub.f32 %v322, %v431
        %v433 = vand.u32 %v432, 4294901760
        %v434 = vsub.f32 %v432, %v433
        %v435 = vand.u32 %v434, 4294901760
        %436 = vmatpush1.xpose.msra.mxu0 %v435
        %437 = vmatprep.subr.mxu0 0.0
        %438 = vmatpush2.xpose.msra.mxu0 0.0
        %439 = vmatprep.subr.mxu0 0.0
        %440 = vmatpush2.xpose.msra.mxu0 0.0
        %441 = vmatprep.subr.mxu0 0.0
        %442 = vmatpush2.xpose.msra.mxu0 0.0
        %443 = vmatprep.subr.mxu0 0.0
        %444 = vmatpush2.xpose.msra.mxu0 0.0
        %445 = vmatprep.subr.mxu0 0.0
        %446 = vmatpush2.xpose.msra.mxu0 0.0
        %447 = vmatprep.subr.mxu0 0.0
        %448 = vmatpush2.xpose.msra.mxu0 0.0
        %449 = vmatprep.subr.mxu0 0.0
        %450 = vmatpush2.xpose.msra.mxu0 0.0
        %451 = vmatprep.subr.mxu0 0.0
        %452 = vmatpush2.xpose.msra.mxu0 0.0
        %453 = vmatprep.subr.mxu0 0.0
        %454 = vmatpush2.xpose.msra.mxu0 0.0
        %455 = vmatprep.subr.mxu0 0.0
        %456 = vmatpush2.xpose.msra.mxu0 0.0
        %457 = vmatprep.subr.mxu0 0.0
        %458 = vmatpush2.xpose.msra.mxu0 0.0
        %459 = vmatprep.subr.mxu0 0.0
        %460 = vmatpush2.xpose.msra.mxu0 0.0
        %461 = vmatprep.subr.mxu0 0.0
        %462 = vmatpush2.xpose.msra.mxu0 0.0
        %463 = vmatprep.subr.mxu0 0.0
        %464 = vmatpush2.xpose.msra.mxu0 0.0
        %465 = vmatprep.subr.mxu0 0.0
        %466 = vmatpush2.xpose.msra.mxu0 0.0
        %467 = vmatprep.subr.mxu0 0.0
        %468 = vmatpush2.xpose.msra.mxu0 0.0
        %469 = vmatprep.mubr.f32.mxu0 0.0
        %v470 = vand.u32 %v319, 4294901760
        %471 = vmatmul.mubr.f32.gmra.mxu0 %v470
        %v472 = vpop.f32.mrf.mxu0
        %v473 = vadd.f32 %v397, %v472
        %v474 = vpop.f32.mrf.mxu0
        %475 = vdwg.mxu0
        %476 = vmatprep.subr.mxu0 0.0
        %477 = vmatpush1.xpose.msra.mxu0 0.0
        %478 = vmatprep.subr.mxu0 0.0
        %479 = vmatpush1.xpose.msra.mxu0 0.0
        %480 = vmatprep.subr.mxu0 0.0
        %481 = vmatpush1.xpose.msra.mxu0 0.0
        %482 = vmatprep.subr.mxu0 0.0
        %483 = vmatpush1.xpose.msra.mxu0 0.0
        %484 = vmatprep.subr.mxu0 0.0
        %485 = vmatpush1.xpose.msra.mxu0 0.0
        %486 = vmatprep.subr.mxu0 0.0
        %487 = vmatpush1.xpose.msra.mxu0 0.0
        %488 = vmatprep.subr.mxu0 0.0
        %489 = vmatpush1.xpose.msra.mxu0 0.0
        %490 = vmatprep.subr.mxu0 0.0
        %491 = vmatpush1.xpose.msra.mxu0 0.0
        %492 = vmatprep.subr.mxu0 0.0
        %493 = vmatpush1.xpose.msra.mxu0 0.0
        %494 = vmatprep.subr.mxu0 0.0
        %495 = vmatpush1.xpose.msra.mxu0 0.0
        %496 = vmatprep.subr.mxu0 0.0
        %497 = vmatpush1.xpose.msra.mxu0 0.0
        %498 = vmatprep.subr.mxu0 0.0
        %499 = vmatpush1.xpose.msra.mxu0 0.0
        %500 = vmatprep.subr.mxu0 0.0
        %501 = vmatpush1.xpose.msra.mxu0 0.0
        %502 = vmatprep.subr.mxu0 0.0
        %503 = vmatpush1.xpose.msra.mxu0 0.0
        %504 = vmatprep.subr.mxu0 0.0
        %505 = vmatpush1.xpose.msra.mxu0 0.0
        %506 = vmatprep.subr.mxu0 0.0
        %v507 = vand.u32 %v322, 4294901760
        %v508 = vsub.f32 %v322, %v507
        %509 = vmatpush1.xpose.msra.mxu0 %v508
        %510 = vmatprep.subr.mxu0 0.0
        %511 = vmatpush2.xpose.msra.mxu0 0.0
        %512 = vmatprep.subr.mxu0 0.0
        %513 = vmatpush2.xpose.msra.mxu0 0.0
        %514 = vmatprep.subr.mxu0 0.0
        %515 = vmatpush2.xpose.msra.mxu0 0.0
        %516 = vmatprep.subr.mxu0 0.0
        %517 = vmatpush2.xpose.msra.mxu0 0.0
        %518 = vmatprep.subr.mxu0 0.0
        %519 = vmatpush2.xpose.msra.mxu0 0.0
        %520 = vmatprep.subr.mxu0 0.0
        %521 = vmatpush2.xpose.msra.mxu0 0.0
        %522 = vmatprep.subr.mxu0 0.0
        %523 = vmatpush2.xpose.msra.mxu0 0.0
        %524 = vmatprep.subr.mxu0 0.0
        %525 = vmatpush2.xpose.msra.mxu0 0.0
        %526 = vmatprep.subr.mxu0 0.0
        %527 = vmatpush2.xpose.msra.mxu0 0.0
        %528 = vmatprep.subr.mxu0 0.0
        %529 = vmatpush2.xpose.msra.mxu0 0.0
        %530 = vmatprep.subr.mxu0 0.0
        %531 = vmatpush2.xpose.msra.mxu0 0.0
        %532 = vmatprep.subr.mxu0 0.0
        %533 = vmatpush2.xpose.msra.mxu0 0.0
        %534 = vmatprep.subr.mxu0 0.0
        %535 = vmatpush2.xpose.msra.mxu0 0.0
        %536 = vmatprep.subr.mxu0 0.0
        %537 = vmatpush2.xpose.msra.mxu0 0.0
        %538 = vmatprep.subr.mxu0 0.0
        %539 = vmatpush2.xpose.msra.mxu0 0.0
        %540 = vmatprep.subr.mxu0 0.0
        %541 = vmatpush2.xpose.msra.mxu0 0.0
        %542 = vmatprep.mubr.f32.mxu0 0.0
        %v543 = vand.u32 %v319, 4294901760
        %v544 = vsub.f32 %v319, %v543
        %545 = vmatmul.mubr.f32.gmra.mxu0 %v544
        %v546 = vpop.f32.mrf.mxu0
        %v547 = vadd.f32 %v473, %v546
        %v548 = vpop.f32.mrf.mxu0
        %549 = vdwg.mxu0
        %550 = vmatprep.subr.mxu0 0.0
        %551 = vmatpush1.xpose.msra.mxu0 0.0
        %552 = vmatprep.subr.mxu0 0.0
        %553 = vmatpush1.xpose.msra.mxu0 0.0
        %554 = vmatprep.subr.mxu0 0.0
        %555 = vmatpush1.xpose.msra.mxu0 0.0
        %556 = vmatprep.subr.mxu0 0.0
        %557 = vmatpush1.xpose.msra.mxu0 0.0
        %558 = vmatprep.subr.mxu0 0.0
        %559 = vmatpush1.xpose.msra.mxu0 0.0
        %560 = vmatprep.subr.mxu0 0.0
        %561 = vmatpush1.xpose.msra.mxu0 0.0
        %562 = vmatprep.subr.mxu0 0.0
        %563 = vmatpush1.xpose.msra.mxu0 0.0
        %564 = vmatprep.subr.mxu0 0.0
        %565 = vmatpush1.xpose.msra.mxu0 0.0
        %566 = vmatprep.subr.mxu0 0.0
        %567 = vmatpush1.xpose.msra.mxu0 0.0
        %568 = vmatprep.subr.mxu0 0.0
        %569 = vmatpush1.xpose.msra.mxu0 0.0
        %570 = vmatprep.subr.mxu0 0.0
        %571 = vmatpush1.xpose.msra.mxu0 0.0
        %572 = vmatprep.subr.mxu0 0.0
        %573 = vmatpush1.xpose.msra.mxu0 0.0
        %574 = vmatprep.subr.mxu0 0.0
        %575 = vmatpush1.xpose.msra.mxu0 0.0
        %576 = vmatprep.subr.mxu0 0.0
        %577 = vmatpush1.xpose.msra.mxu0 0.0
        %578 = vmatprep.subr.mxu0 0.0
        %579 = vmatpush1.xpose.msra.mxu0 0.0
        %580 = vmatprep.subr.mxu0 0.0
        %v581 = vand.u32 %v322, 4294901760
        %582 = vmatpush1.xpose.msra.mxu0 %v581
        %583 = vmatprep.subr.mxu0 0.0
        %584 = vmatpush2.xpose.msra.mxu0 0.0
        %585 = vmatprep.subr.mxu0 0.0
        %586 = vmatpush2.xpose.msra.mxu0 0.0
        %587 = vmatprep.subr.mxu0 0.0
        %588 = vmatpush2.xpose.msra.mxu0 0.0
        %589 = vmatprep.subr.mxu0 0.0
        %590 = vmatpush2.xpose.msra.mxu0 0.0
        %591 = vmatprep.subr.mxu0 0.0
        %592 = vmatpush2.xpose.msra.mxu0 0.0
        %593 = vmatprep.subr.mxu0 0.0
        %594 = vmatpush2.xpose.msra.mxu0 0.0
        %595 = vmatprep.subr.mxu0 0.0
        %596 = vmatpush2.xpose.msra.mxu0 0.0
        %597 = vmatprep.subr.mxu0 0.0
        %598 = vmatpush2.xpose.msra.mxu0 0.0
        %599 = vmatprep.subr.mxu0 0.0
        %600 = vmatpush2.xpose.msra.mxu0 0.0
        %601 = vmatprep.subr.mxu0 0.0
        %602 = vmatpush2.xpose.msra.mxu0 0.0
        %603 = vmatprep.subr.mxu0 0.0
        %604 = vmatpush2.xpose.msra.mxu0 0.0
        %605 = vmatprep.subr.mxu0 0.0
        %606 = vmatpush2.xpose.msra.mxu0 0.0
        %607 = vmatprep.subr.mxu0 0.0
        %608 = vmatpush2.xpose.msra.mxu0 0.0
        %609 = vmatprep.subr.mxu0 0.0
        %610 = vmatpush2.xpose.msra.mxu0 0.0
        %611 = vmatprep.subr.mxu0 0.0
        %612 = vmatpush2.xpose.msra.mxu0 0.0
        %613 = vmatprep.subr.mxu0 0.0
        %614 = vmatpush2.xpose.msra.mxu0 0.0
        %615 = vmatprep.mubr.f32.mxu0 0.0
        %v616 = vand.u32 %v319, 4294901760
        %v617 = vsub.f32 %v319, %v616
        %v618 = vand.u32 %v617, 4294901760
        %619 = vmatmul.mubr.f32.gmra.mxu0 %v618
        %v620 = vpop.f32.mrf.mxu0
        %v621 = vadd.f32 %v547, %v620
        %v622 = vpop.f32.mrf.mxu0
        %623 = vdwg.mxu0
        %624 = vmatprep.subr.mxu0 0.0
        %625 = vmatpush1.xpose.msra.mxu0 0.0
        %626 = vmatprep.subr.mxu0 0.0
        %627 = vmatpush1.xpose.msra.mxu0 0.0
        %628 = vmatprep.subr.mxu0 0.0
        %629 = vmatpush1.xpose.msra.mxu0 0.0
        %630 = vmatprep.subr.mxu0 0.0
        %631 = vmatpush1.xpose.msra.mxu0 0.0
        %632 = vmatprep.subr.mxu0 0.0
        %633 = vmatpush1.xpose.msra.mxu0 0.0
        %634 = vmatprep.subr.mxu0 0.0
        %635 = vmatpush1.xpose.msra.mxu0 0.0
        %636 = vmatprep.subr.mxu0 0.0
        %637 = vmatpush1.xpose.msra.mxu0 0.0
        %638 = vmatprep.subr.mxu0 0.0
        %639 = vmatpush1.xpose.msra.mxu0 0.0
        %640 = vmatprep.subr.mxu0 0.0
        %641 = vmatpush1.xpose.msra.mxu0 0.0
        %642 = vmatprep.subr.mxu0 0.0
        %643 = vmatpush1.xpose.msra.mxu0 0.0
        %644 = vmatprep.subr.mxu0 0.0
        %645 = vmatpush1.xpose.msra.mxu0 0.0
        %646 = vmatprep.subr.mxu0 0.0
        %647 = vmatpush1.xpose.msra.mxu0 0.0
        %648 = vmatprep.subr.mxu0 0.0
        %649 = vmatpush1.xpose.msra.mxu0 0.0
        %650 = vmatprep.subr.mxu0 0.0
        %651 = vmatpush1.xpose.msra.mxu0 0.0
        %652 = vmatprep.subr.mxu0 0.0
        %653 = vmatpush1.xpose.msra.mxu0 0.0
        %654 = vmatprep.subr.mxu0 0.0
        %v655 = vand.u32 %v322, 4294901760
        %v656 = vsub.f32 %v322, %v655
        %v657 = vand.u32 %v656, 4294901760
        %658 = vmatpush1.xpose.msra.mxu0 %v657
        %659 = vmatprep.subr.mxu0 0.0
        %660 = vmatpush2.xpose.msra.mxu0 0.0
        %661 = vmatprep.subr.mxu0 0.0
        %662 = vmatpush2.xpose.msra.mxu0 0.0
        %663 = vmatprep.subr.mxu0 0.0
        %664 = vmatpush2.xpose.msra.mxu0 0.0
        %665 = vmatprep.subr.mxu0 0.0
        %666 = vmatpush2.xpose.msra.mxu0 0.0
        %667 = vmatprep.subr.mxu0 0.0
        %668 = vmatpush2.xpose.msra.mxu0 0.0
        %669 = vmatprep.subr.mxu0 0.0
        %670 = vmatpush2.xpose.msra.mxu0 0.0
        %671 = vmatprep.subr.mxu0 0.0
        %672 = vmatpush2.xpose.msra.mxu0 0.0
        %673 = vmatprep.subr.mxu0 0.0
        %674 = vmatpush2.xpose.msra.mxu0 0.0
        %675 = vmatprep.subr.mxu0 0.0
        %676 = vmatpush2.xpose.msra.mxu0 0.0
        %677 = vmatprep.subr.mxu0 0.0
        %678 = vmatpush2.xpose.msra.mxu0 0.0
        %679 = vmatprep.subr.mxu0 0.0
        %680 = vmatpush2.xpose.msra.mxu0 0.0
        %681 = vmatprep.subr.mxu0 0.0
        %682 = vmatpush2.xpose.msra.mxu0 0.0
        %683 = vmatprep.subr.mxu0 0.0
        %684 = vmatpush2.xpose.msra.mxu0 0.0
        %685 = vmatprep.subr.mxu0 0.0
        %686 = vmatpush2.xpose.msra.mxu0 0.0
        %687 = vmatprep.subr.mxu0 0.0
        %688 = vmatpush2.xpose.msra.mxu0 0.0
        %689 = vmatprep.subr.mxu0 0.0
        %690 = vmatpush2.xpose.msra.mxu0 0.0
        %691 = vmatprep.mubr.f32.mxu0 0.0
        %v692 = vand.u32 %v319, 4294901760
        %693 = vmatmul.mubr.f32.gmra.mxu0 %v692
        %v694 = vpop.f32.mrf.mxu0
        %v695 = vadd.f32 %v621, %v694
        %v696 = vpop.f32.mrf.mxu0
        %697 = vdwg.mxu0
        %698 = vmatprep.subr.mxu0 0.0
        %699 = vmatpush1.xpose.msra.mxu0 0.0
        %700 = vmatprep.subr.mxu0 0.0
        %701 = vmatpush1.xpose.msra.mxu0 0.0
        %702 = vmatprep.subr.mxu0 0.0
        %703 = vmatpush1.xpose.msra.mxu0 0.0
        %704 = vmatprep.subr.mxu0 0.0
        %705 = vmatpush1.xpose.msra.mxu0 0.0
        %706 = vmatprep.subr.mxu0 0.0
        %707 = vmatpush1.xpose.msra.mxu0 0.0
        %708 = vmatprep.subr.mxu0 0.0
        %709 = vmatpush1.xpose.msra.mxu0 0.0
        %710 = vmatprep.subr.mxu0 0.0
        %711 = vmatpush1.xpose.msra.mxu0 0.0
        %712 = vmatprep.subr.mxu0 0.0
        %713 = vmatpush1.xpose.msra.mxu0 0.0
        %714 = vmatprep.subr.mxu0 0.0
        %715 = vmatpush1.xpose.msra.mxu0 0.0
        %716 = vmatprep.subr.mxu0 0.0
        %717 = vmatpush1.xpose.msra.mxu0 0.0
        %718 = vmatprep.subr.mxu0 0.0
        %719 = vmatpush1.xpose.msra.mxu0 0.0
        %720 = vmatprep.subr.mxu0 0.0
        %721 = vmatpush1.xpose.msra.mxu0 0.0
        %722 = vmatprep.subr.mxu0 0.0
        %723 = vmatpush1.xpose.msra.mxu0 0.0
        %724 = vmatprep.subr.mxu0 0.0
        %725 = vmatpush1.xpose.msra.mxu0 0.0
        %726 = vmatprep.subr.mxu0 0.0
        %727 = vmatpush1.xpose.msra.mxu0 0.0
        %728 = vmatprep.subr.mxu0 0.0
        %v729 = vand.u32 %v322, 4294901760
        %730 = vmatpush1.xpose.msra.mxu0 %v729
        %731 = vmatprep.subr.mxu0 0.0
        %732 = vmatpush2.xpose.msra.mxu0 0.0
        %733 = vmatprep.subr.mxu0 0.0
        %734 = vmatpush2.xpose.msra.mxu0 0.0
        %735 = vmatprep.subr.mxu0 0.0
        %736 = vmatpush2.xpose.msra.mxu0 0.0
        %737 = vmatprep.subr.mxu0 0.0
        %738 = vmatpush2.xpose.msra.mxu0 0.0
        %739 = vmatprep.subr.mxu0 0.0
        %740 = vmatpush2.xpose.msra.mxu0 0.0
        %741 = vmatprep.subr.mxu0 0.0
        %742 = vmatpush2.xpose.msra.mxu0 0.0
        %743 = vmatprep.subr.mxu0 0.0
        %744 = vmatpush2.xpose.msra.mxu0 0.0
        %745 = vmatprep.subr.mxu0 0.0
        %746 = vmatpush2.xpose.msra.mxu0 0.0
        %747 = vmatprep.subr.mxu0 0.0
        %748 = vmatpush2.xpose.msra.mxu0 0.0
        %749 = vmatprep.subr.mxu0 0.0
        %750 = vmatpush2.xpose.msra.mxu0 0.0
        %751 = vmatprep.subr.mxu0 0.0
        %752 = vmatpush2.xpose.msra.mxu0 0.0
        %753 = vmatprep.subr.mxu0 0.0
        %754 = vmatpush2.xpose.msra.mxu0 0.0
        %755 = vmatprep.subr.mxu0 0.0
        %756 = vmatpush2.xpose.msra.mxu0 0.0
        %757 = vmatprep.subr.mxu0 0.0
        %758 = vmatpush2.xpose.msra.mxu0 0.0
        %759 = vmatprep.subr.mxu0 0.0
        %760 = vmatpush2.xpose.msra.mxu0 0.0
        %761 = vmatprep.subr.mxu0 0.0
        %762 = vmatpush2.xpose.msra.mxu0 0.0
        %763 = vmatprep.mubr.f32.mxu0 0.0
        %v764 = vand.u32 %v319, 4294901760
        %765 = vmatmul.mubr.f32.gmra.mxu0 %v764
        %v766 = vpop.f32.mrf.mxu0
        %v767 = vadd.f32 %v695, %v766
        %v768 = vpop.f32.mrf.mxu0
        %769 = vdwg.mxu0
        %v770 = vmul.f32 %v767, 0.17677669
        %vm771 = vcmask 64512
        %v772 = vsel %vm771, %v770, -inf
        %773 = vmax.xlane.f32.xlu0 %v772
        %v774 = vpop.xlane.xlu0 %773
        %v775 = vsub.f32 %v770, %v774
        %v776 = vmul.f32 %v775, 1.442695
        %v777 = vpow.pop %v776
        %v778 = vsel %vm771, %v777, 0.0
        %779 = vadd.xlane.f32.xlu0 %v778
        %v780 = vpop.xlane.xlu0 %779
        %v781 = vrcp.pop %v780
        %v782 = vmul.f32 1.0, %v781
        %v783 = vmul.f32 %v777, %v782
        %v785 = vsel %vm771, %v783, 0
        %787 = vmatprep.subr.mxu0 0.0
        %788 = vmatpush1.msra.mxu0 0.0
        %789 = vmatprep.subr.mxu0 0.0
        %790 = vmatpush1.msra.mxu0 0.0
        %791 = vmatprep.subr.mxu0 0.0
        %792 = vmatpush1.msra.mxu0 0.0
        %793 = vmatprep.subr.mxu0 0.0
        %794 = vmatpush1.msra.mxu0 0.0
        %795 = vmatprep.subr.mxu0 0.0
        %796 = vmatpush1.msra.mxu0 0.0
        %797 = vmatprep.subr.mxu0 0.0
        %798 = vmatpush1.msra.mxu0 0.0
        %799 = vmatprep.subr.mxu0 0.0
        %800 = vmatpush1.msra.mxu0 0.0
        %801 = vmatprep.subr.mxu0 0.0
        %802 = vmatpush1.msra.mxu0 0.0
        %803 = vmatprep.subr.mxu0 0.0
        %804 = vmatpush1.msra.mxu0 0.0
        %805 = vmatprep.subr.mxu0 0.0
        %806 = vmatpush1.msra.mxu0 0.0
        %807 = vmatprep.subr.mxu0 0.0
        %808 = vmatpush1.msra.mxu0 0.0
        %809 = vmatprep.subr.mxu0 0.0
        %810 = vmatpush1.msra.mxu0 0.0
        %811 = vmatprep.subr.mxu0 0.0
        %812 = vmatpush1.msra.mxu0 0.0
        %813 = vmatprep.subr.mxu0 0.0
        %814 = vmatpush1.msra.mxu0 0.0
        %815 = vmatprep.subr.mxu0 0.0
        %816 = vmatpush1.msra.mxu0 0.0
        %817 = vmatprep.subr.mxu0 0.0
        %v818 = vand.u32 %v316, 4294901760
        %819 = vmatpush1.msra.mxu0 %v818
        %820 = vmatprep.subr.mxu0 0.0
        %821 = vmatpush2.msra.mxu0 0.0
        %822 = vmatprep.subr.mxu0 0.0
        %823 = vmatpush2.msra.mxu0 0.0
        %824 = vmatprep.subr.mxu0 0.0
        %825 = vmatpush2.msra.mxu0 0.0
        %826 = vmatprep.subr.mxu0 0.0
        %827 = vmatpush2.msra.mxu0 0.0
        %828 = vmatprep.subr.mxu0 0.0
        %829 = vmatpush2.msra.mxu0 0.0
        %830 = vmatprep.subr.mxu0 0.0
        %831 = vmatpush2.msra.mxu0 0.0
        %832 = vmatprep.subr.mxu0 0.0
        %833 = vmatpush2.msra.mxu0 0.0
        %834 = vmatprep.subr.mxu0 0.0
        %835 = vmatpush2.msra.mxu0 0.0
        %836 = vmatprep.subr.mxu0 0.0
        %837 = vmatpush2.msra.mxu0 0.0
        %838 = vmatprep.subr.mxu0 0.0
        %839 = vmatpush2.msra.mxu0 0.0
        %840 = vmatprep.subr.mxu0 0.0
        %841 = vmatpush2.msra.mxu0 0.0
        %842 = vmatprep.subr.mxu0 0.0
        %843 = vmatpush2.msra.mxu0 0.0
        %844 = vmatprep.subr.mxu0 0.0
        %845 = vmatpush2.msra.mxu0 0.0
        %846 = vmatprep.subr.mxu0 0.0
        %847 = vmatpush2.msra.mxu0 0.0
        %848 = vmatprep.subr.mxu0 0.0
        %849 = vmatpush2.msra.mxu0 0.0
        %850 = vmatprep.subr.mxu0 0.0
        %851 = vmatpush2.msra.mxu0 0.0
        %852 = vmatprep.mubr.f32.mxu0 0.0
        %v853 = vand.u32 %v785, 4294901760
        %v854 = vsub.f32 %v785, %v853
        %v855 = vand.u32 %v854, 4294901760
        %v856 = vsub.f32 %v854, %v855
        %v857 = vand.u32 %v856, 4294901760
        %858 = vmatmul.mubr.f32.gmra.mxu0 %v857
        %v859 = vpop.f32.mrf.mxu0
        %v860 = vadd.f32 0.0, %v859
        %v861 = vpop.f32.mrf.mxu0
        %862 = vdwg.mxu0
        %863 = vmatprep.subr.mxu0 0.0
        %864 = vmatpush1.msra.mxu0 0.0
        %865 = vmatprep.subr.mxu0 0.0
        %866 = vmatpush1.msra.mxu0 0.0
        %867 = vmatprep.subr.mxu0 0.0
        %868 = vmatpush1.msra.mxu0 0.0
        %869 = vmatprep.subr.mxu0 0.0
        %870 = vmatpush1.msra.mxu0 0.0
        %871 = vmatprep.subr.mxu0 0.0
        %872 = vmatpush1.msra.mxu0 0.0
        %873 = vmatprep.subr.mxu0 0.0
        %874 = vmatpush1.msra.mxu0 0.0
        %875 = vmatprep.subr.mxu0 0.0
        %876 = vmatpush1.msra.mxu0 0.0
        %877 = vmatprep.subr.mxu0 0.0
        %878 = vmatpush1.msra.mxu0 0.0
        %879 = vmatprep.subr.mxu0 0.0
        %880 = vmatpush1.msra.mxu0 0.0
        %881 = vmatprep.subr.mxu0 0.0
        %882 = vmatpush1.msra.mxu0 0.0
        %883 = vmatprep.subr.mxu0 0.0
        %884 = vmatpush1.msra.mxu0 0.0
        %885 = vmatprep.subr.mxu0 0.0
        %886 = vmatpush1.msra.mxu0 0.0
        %887 = vmatprep.subr.mxu0 0.0
        %888 = vmatpush1.msra.mxu0 0.0
        %889 = vmatprep.subr.mxu0 0.0
        %890 = vmatpush1.msra.mxu0 0.0
        %891 = vmatprep.subr.mxu0 0.0
        %892 = vmatpush1.msra.mxu0 0.0
        %893 = vmatprep.subr.mxu0 0.0
        %v894 = vand.u32 %v316, 4294901760
        %v895 = vsub.f32 %v316, %v894
        %v896 = vand.u32 %v895, 4294901760
        %v897 = vsub.f32 %v895, %v896
        %v898 = vand.u32 %v897, 4294901760
        %899 = vmatpush1.msra.mxu0 %v898
        %900 = vmatprep.subr.mxu0 0.0
        %901 = vmatpush2.msra.mxu0 0.0
        %902 = vmatprep.subr.mxu0 0.0
        %903 = vmatpush2.msra.mxu0 0.0
        %904 = vmatprep.subr.mxu0 0.0
        %905 = vmatpush2.msra.mxu0 0.0
        %906 = vmatprep.subr.mxu0 0.0
        %907 = vmatpush2.msra.mxu0 0.0
        %908 = vmatprep.subr.mxu0 0.0
        %909 = vmatpush2.msra.mxu0 0.0
        %910 = vmatprep.subr.mxu0 0.0
        %911 = vmatpush2.msra.mxu0 0.0
        %912 = vmatprep.subr.mxu0 0.0
        %913 = vmatpush2.msra.mxu0 0.0
        %914 = vmatprep.subr.mxu0 0.0
        %915 = vmatpush2.msra.mxu0 0.0
        %916 = vmatprep.subr.mxu0 0.0
        %917 = vmatpush2.msra.mxu0 0.0
        %918 = vmatprep.subr.mxu0 0.0
        %919 = vmatpush2.msra.mxu0 0.0
        %920 = vmatprep.subr.mxu0 0.0
        %921 = vmatpush2.msra.mxu0 0.0
        %922 = vmatprep.subr.mxu0 0.0
        %923 = vmatpush2.msra.mxu0 0.0
        %924 = vmatprep.subr.mxu0 0.0
        %925 = vmatpush2.msra.mxu0 0.0
        %926 = vmatprep.subr.mxu0 0.0
        %927 = vmatpush2.msra.mxu0 0.0
        %928 = vmatprep.subr.mxu0 0.0
        %929 = vmatpush2.msra.mxu0 0.0
        %930 = vmatprep.subr.mxu0 0.0
        %931 = vmatpush2.msra.mxu0 0.0
        %932 = vmatprep.mubr.f32.mxu0 0.0
        %v933 = vand.u32 %v785, 4294901760
        %934 = vmatmul.mubr.f32.gmra.mxu0 %v933
        %v935 = vpop.f32.mrf.mxu0
        %v936 = vadd.f32 %v860, %v935
        %v937 = vpop.f32.mrf.mxu0
        %938 = vdwg.mxu0
        %939 = vmatprep.subr.mxu0 0.0
        %940 = vmatpush1.msra.mxu0 0.0
        %941 = vmatprep.subr.mxu0 0.0
        %942 = vmatpush1.msra.mxu0 0.0
        %943 = vmatprep.subr.mxu0 0.0
        %944 = vmatpush1.msra.mxu0 0.0
        %945 = vmatprep.subr.mxu0 0.0
        %946 = vmatpush1.msra.mxu0 0.0
        %947 = vmatprep.subr.mxu0 0.0
        %948 = vmatpush1.msra.mxu0 0.0
        %949 = vmatprep.subr.mxu0 0.0
        %950 = vmatpush1.msra.mxu0 0.0
        %951 = vmatprep.subr.mxu0 0.0
        %952 = vmatpush1.msra.mxu0 0.0
        %953 = vmatprep.subr.mxu0 0.0
        %954 = vmatpush1.msra.mxu0 0.0
        %955 = vmatprep.subr.mxu0 0.0
        %956 = vmatpush1.msra.mxu0 0.0
        %957 = vmatprep.subr.mxu0 0.0
        %958 = vmatpush1.msra.mxu0 0.0
        %959 = vmatprep.subr.mxu0 0.0
        %960 = vmatpush1.msra.mxu0 0.0
        %961 = vmatprep.subr.mxu0 0.0
        %962 = vmatpush1.msra.mxu0 0.0
        %963 = vmatprep.subr.mxu0 0.0
        %964 = vmatpush1.msra.mxu0 0.0
        %965 = vmatprep.subr.mxu0 0.0
        %966 = vmatpush1.msra.mxu0 0.0
        %967 = vmatprep.subr.mxu0 0.0
        %968 = vmatpush1.msra.mxu0 0.0
        %969 = vmatprep.subr.mxu0 0.0
        %v970 = vand.u32 %v316, 4294901760
        %v971 = vsub.f32 %v316, %v970
        %972 = vmatpush1.msra.mxu0 %v971
        %973 = vmatprep.subr.mxu0 0.0
        %974 = vmatpush2.msra.mxu0 0.0
        %975 = vmatprep.subr.mxu0 0.0
        %976 = vmatpush2.msra.mxu0 0.0
        %977 = vmatprep.subr.mxu0 0.0
        %978 = vmatpush2.msra.mxu0 0.0
        %979 = vmatprep.subr.mxu0 0.0
        %980 = vmatpush2.msra.mxu0 0.0
        %981 = vmatprep.subr.mxu0 0.0
        %982 = vmatpush2.msra.mxu0 0.0
        %983 = vmatprep.subr.mxu0 0.0
        %984 = vmatpush2.msra.mxu0 0.0
        %985 = vmatprep.subr.mxu0 0.0
        %986 = vmatpush2.msra.mxu0 0.0
        %987 = vmatprep.subr.mxu0 0.0
        %988 = vmatpush2.msra.mxu0 0.0
        %989 = vmatprep.subr.mxu0 0.0
        %990 = vmatpush2.msra.mxu0 0.0
        %991 = vmatprep.subr.mxu0 0.0
        %992 = vmatpush2.msra.mxu0 0.0
        %993 = vmatprep.subr.mxu0 0.0
        %994 = vmatpush2.msra.mxu0 0.0
        %995 = vmatprep.subr.mxu0 0.0
        %996 = vmatpush2.msra.mxu0 0.0
        %997 = vmatprep.subr.mxu0 0.0
        %998 = vmatpush2.msra.mxu0 0.0
        %999 = vmatprep.subr.mxu0 0.0
        %1000 = vmatpush2.msra.mxu0 0.0
        %1001 = vmatprep.subr.mxu0 0.0
        %1002 = vmatpush2.msra.mxu0 0.0
        %1003 = vmatprep.subr.mxu0 0.0
        %1004 = vmatpush2.msra.mxu0 0.0
        %1005 = vmatprep.mubr.f32.mxu0 0.0
        %v1006 = vand.u32 %v785, 4294901760
        %v1007 = vsub.f32 %v785, %v1006
        %1008 = vmatmul.mubr.f32.gmra.mxu0 %v1007
        %v1009 = vpop.f32.mrf.mxu0
        %v1010 = vadd.f32 %v936, %v1009
        %v1011 = vpop.f32.mrf.mxu0
        %1012 = vdwg.mxu0
        %1013 = vmatprep.subr.mxu0 0.0
        %1014 = vmatpush1.msra.mxu0 0.0
        %1015 = vmatprep.subr.mxu0 0.0
        %1016 = vmatpush1.msra.mxu0 0.0
        %1017 = vmatprep.subr.mxu0 0.0
        %1018 = vmatpush1.msra.mxu0 0.0
        %1019 = vmatprep.subr.mxu0 0.0
        %1020 = vmatpush1.msra.mxu0 0.0
        %1021 = vmatprep.subr.mxu0 0.0
        %1022 = vmatpush1.msra.mxu0 0.0
        %1023 = vmatprep.subr.mxu0 0.0
        %1024 = vmatpush1.msra.mxu0 0.0
        %1025 = vmatprep.subr.mxu0 0.0
        %1026 = vmatpush1.msra.mxu0 0.0
        %1027 = vmatprep.subr.mxu0 0.0
        %1028 = vmatpush1.msra.mxu0 0.0
        %1029 = vmatprep.subr.mxu0 0.0
        %1030 = vmatpush1.msra.mxu0 0.0
        %1031 = vmatprep.subr.mxu0 0.0
        %1032 = vmatpush1.msra.mxu0 0.0
        %1033 = vmatprep.subr.mxu0 0.0
        %1034 = vmatpush1.msra.mxu0 0.0
        %1035 = vmatprep.subr.mxu0 0.0
        %1036 = vmatpush1.msra.mxu0 0.0
        %1037 = vmatprep.subr.mxu0 0.0
        %1038 = vmatpush1.msra.mxu0 0.0
        %1039 = vmatprep.subr.mxu0 0.0
        %1040 = vmatpush1.msra.mxu0 0.0
        %1041 = vmatprep.subr.mxu0 0.0
        %1042 = vmatpush1.msra.mxu0 0.0
        %1043 = vmatprep.subr.mxu0 0.0
        %v1044 = vand.u32 %v316, 4294901760
        %1045 = vmatpush1.msra.mxu0 %v1044
        %1046 = vmatprep.subr.mxu0 0.0
        %1047 = vmatpush2.msra.mxu0 0.0
        %1048 = vmatprep.subr.mxu0 0.0
        %1049 = vmatpush2.msra.mxu0 0.0
        %1050 = vmatprep.subr.mxu0 0.0
        %1051 = vmatpush2.msra.mxu0 0.0
        %1052 = vmatprep.subr.mxu0 0.0
        %1053 = vmatpush2.msra.mxu0 0.0
        %1054 = vmatprep.subr.mxu0 0.0
        %1055 = vmatpush2.msra.mxu0 0.0
        %1056 = vmatprep.subr.mxu0 0.0
        %1057 = vmatpush2.msra.mxu0 0.0
        %1058 = vmatprep.subr.mxu0 0.0
        %1059 = vmatpush2.msra.mxu0 0.0
        %1060 = vmatprep.subr.mxu0 0.0
        %1061 = vmatpush2.msra.mxu0 0.0
        %1062 = vmatprep.subr.mxu0 0.0
        %1063 = vmatpush2.msra.mxu0 0.0
        %1064 = vmatprep.subr.mxu0 0.0
        %1065 = vmatpush2.msra.mxu0 0.0
        %1066 = vmatprep.subr.mxu0 0.0
        %1067 = vmatpush2.msra.mxu0 0.0
        %1068 = vmatprep.subr.mxu0 0.0
        %1069 = vmatpush2.msra.mxu0 0.0
        %1070 = vmatprep.subr.mxu0 0.0
        %1071 = vmatpush2.msra.mxu0 0.0
        %1072 = vmatprep.subr.mxu0 0.0
        %1073 = vmatpush2.msra.mxu0 0.0
        %1074 = vmatprep.subr.mxu0 0.0
        %1075 = vmatpush2.msra.mxu0 0.0
        %1076 = vmatprep.subr.mxu0 0.0
        %1077 = vmatpush2.msra.mxu0 0.0
        %1078 = vmatprep.mubr.f32.mxu0 0.0
        %v1079 = vand.u32 %v785, 4294901760
        %v1080 = vsub.f32 %v785, %v1079
        %v1081 = vand.u32 %v1080, 4294901760
        %1082 = vmatmul.mubr.f32.gmra.mxu0 %v1081
        %v1083 = vpop.f32.mrf.mxu0
        %v1084 = vadd.f32 %v1010, %v1083
        %v1085 = vpop.f32.mrf.mxu0
        %1086 = vdwg.mxu0
        %1087 = vmatprep.subr.mxu0 0.0
        %1088 = vmatpush1.msra.mxu0 0.0
        %1089 = vmatprep.subr.mxu0 0.0
        %1090 = vmatpush1.msra.mxu0 0.0
        %1091 = vmatprep.subr.mxu0 0.0
        %1092 = vmatpush1.msra.mxu0 0.0
        %1093 = vmatprep.subr.mxu0 0.0
        %1094 = vmatpush1.msra.mxu0 0.0
        %1095 = vmatprep.subr.mxu0 0.0
        %1096 = vmatpush1.msra.mxu0 0.0
        %1097 = vmatprep.subr.mxu0 0.0
        %1098 = vmatpush1.msra.mxu0 0.0
        %1099 = vmatprep.subr.mxu0 0.0
        %1100 = vmatpush1.msra.mxu0 0.0
        %1101 = vmatprep.subr.mxu0 0.0
        %1102 = vmatpush1.msra.mxu0 0.0
        %1103 = vmatprep.subr.mxu0 0.0
        %1104 = vmatpush1.msra.mxu0 0.0
        %1105 = vmatprep.subr.mxu0 0.0
        %1106 = vmatpush1.msra.mxu0 0.0
        %1107 = vmatprep.subr.mxu0 0.0
        %1108 = vmatpush1.msra.mxu0 0.0
        %1109 = vmatprep.subr.mxu0 0.0
        %1110 = vmatpush1.msra.mxu0 0.0
        %1111 = vmatprep.subr.mxu0 0.0
        %1112 = vmatpush1.msra.mxu0 0.0
        %1113 = vmatprep.subr.mxu0 0.0
        %1114 = vmatpush1.msra.mxu0 0.0
        %1115 = vmatprep.subr.mxu0 0.0
        %1116 = vmatpush1.msra.mxu0 0.0
        %1117 = vmatprep.subr.mxu0 0.0
        %v1118 = vand.u32 %v316, 4294901760
        %v1119 = vsub.f32 %v316, %v1118
        %v1120 = vand.u32 %v1119, 4294901760
        %1121 = vmatpush1.msra.mxu0 %v1120
        %1122 = vmatprep.subr.mxu0 0.0
        %1123 = vmatpush2.msra.mxu0 0.0
        %1124 = vmatprep.subr.mxu0 0.0
        %1125 = vmatpush2.msra.mxu0 0.0
        %1126 = vmatprep.subr.mxu0 0.0
        %1127 = vmatpush2.msra.mxu0 0.0
        %1128 = vmatprep.subr.mxu0 0.0
        %1129 = vmatpush2.msra.mxu0 0.0
        %1130 = vmatprep.subr.mxu0 0.0
        %1131 = vmatpush2.msra.mxu0 0.0
        %1132 = vmatprep.subr.mxu0 0.0
        %1133 = vmatpush2.msra.mxu0 0.0
        %1134 = vmatprep.subr.mxu0 0.0
        %1135 = vmatpush2.msra.mxu0 0.0
        %1136 = vmatprep.subr.mxu0 0.0
        %1137 = vmatpush2.msra.mxu0 0.0
        %1138 = vmatprep.subr.mxu0 0.0
        %1139 = vmatpush2.msra.mxu0 0.0
        %1140 = vmatprep.subr.mxu0 0.0
        %1141 = vmatpush2.msra.mxu0 0.0
        %1142 = vmatprep.subr.mxu0 0.0
        %1143 = vmatpush2.msra.mxu0 0.0
        %1144 = vmatprep.subr.mxu0 0.0
        %1145 = vmatpush2.msra.mxu0 0.0
        %1146 = vmatprep.subr.mxu0 0.0
        %1147 = vmatpush2.msra.mxu0 0.0
        %1148 = vmatprep.subr.mxu0 0.0
        %1149 = vmatpush2.msra.mxu0 0.0
        %1150 = vmatprep.subr.mxu0 0.0
        %1151 = vmatpush2.msra.mxu0 0.0
        %1152 = vmatprep.subr.mxu0 0.0
        %1153 = vmatpush2.msra.mxu0 0.0
        %1154 = vmatprep.mubr.f32.mxu0 0.0
        %v1155 = vand.u32 %v785, 4294901760
        %1156 = vmatmul.mubr.f32.gmra.mxu0 %v1155
        %v1157 = vpop.f32.mrf.mxu0
        %v1158 = vadd.f32 %v1084, %v1157
        %v1159 = vpop.f32.mrf.mxu0
        %1160 = vdwg.mxu0
        %1161 = vmatprep.subr.mxu0 0.0
        %1162 = vmatpush1.msra.mxu0 0.0
        %1163 = vmatprep.subr.mxu0 0.0
        %1164 = vmatpush1.msra.mxu0 0.0
        %1165 = vmatprep.subr.mxu0 0.0
        %1166 = vmatpush1.msra.mxu0 0.0
        %1167 = vmatprep.subr.mxu0 0.0
        %1168 = vmatpush1.msra.mxu0 0.0
        %1169 = vmatprep.subr.mxu0 0.0
        %1170 = vmatpush1.msra.mxu0 0.0
        %1171 = vmatprep.subr.mxu0 0.0
        %1172 = vmatpush1.msra.mxu0 0.0
        %1173 = vmatprep.subr.mxu0 0.0
        %1174 = vmatpush1.msra.mxu0 0.0
        %1175 = vmatprep.subr.mxu0 0.0
        %1176 = vmatpush1.msra.mxu0 0.0
        %1177 = vmatprep.subr.mxu0 0.0
        %1178 = vmatpush1.msra.mxu0 0.0
        %1179 = vmatprep.subr.mxu0 0.0
        %1180 = vmatpush1.msra.mxu0 0.0
        %1181 = vmatprep.subr.mxu0 0.0
        %1182 = vmatpush1.msra.mxu0 0.0
        %1183 = vmatprep.subr.mxu0 0.0
        %1184 = vmatpush1.msra.mxu0 0.0
        %1185 = vmatprep.subr.mxu0 0.0
        %1186 = vmatpush1.msra.mxu0 0.0
        %1187 = vmatprep.subr.mxu0 0.0
        %1188 = vmatpush1.msra.mxu0 0.0
        %1189 = vmatprep.subr.mxu0 0.0
        %1190 = vmatpush1.msra.mxu0 0.0
        %1191 = vmatprep.subr.mxu0 0.0
        %v1192 = vand.u32 %v316, 4294901760
        %1193 = vmatpush1.msra.mxu0 %v1192
        %1194 = vmatprep.subr.mxu0 0.0
        %1195 = vmatpush2.msra.mxu0 0.0
        %1196 = vmatprep.subr.mxu0 0.0
        %1197 = vmatpush2.msra.mxu0 0.0
        %1198 = vmatprep.subr.mxu0 0.0
        %1199 = vmatpush2.msra.mxu0 0.0
        %1200 = vmatprep.subr.mxu0 0.0
        %1201 = vmatpush2.msra.mxu0 0.0
        %1202 = vmatprep.subr.mxu0 0.0
        %1203 = vmatpush2.msra.mxu0 0.0
        %1204 = vmatprep.subr.mxu0 0.0
        %1205 = vmatpush2.msra.mxu0 0.0
        %1206 = vmatprep.subr.mxu0 0.0
        %1207 = vmatpush2.msra.mxu0 0.0
        %1208 = vmatprep.subr.mxu0 0.0
        %1209 = vmatpush2.msra.mxu0 0.0
        %1210 = vmatprep.subr.mxu0 0.0
        %1211 = vmatpush2.msra.mxu0 0.0
        %1212 = vmatprep.subr.mxu0 0.0
        %1213 = vmatpush2.msra.mxu0 0.0
        %1214 = vmatprep.subr.mxu0 0.0
        %1215 = vmatpush2.msra.mxu0 0.0
        %1216 = vmatprep.subr.mxu0 0.0
        %1217 = vmatpush2.msra.mxu0 0.0
        %1218 = vmatprep.subr.mxu0 0.0
        %1219 = vmatpush2.msra.mxu0 0.0
        %1220 = vmatprep.subr.mxu0 0.0
        %1221 = vmatpush2.msra.mxu0 0.0
        %1222 = vmatprep.subr.mxu0 0.0
        %1223 = vmatpush2.msra.mxu0 0.0
        %1224 = vmatprep.subr.mxu0 0.0
        %1225 = vmatpush2.msra.mxu0 0.0
        %1226 = vmatprep.mubr.f32.mxu0 0.0
        %v1227 = vand.u32 %v785, 4294901760
        %1228 = vmatmul.mubr.f32.gmra.mxu0 %v1227
        %v1229 = vpop.f32.mrf.mxu0
        %v1230 = vadd.f32 %v1158, %v1229
        %v1231 = vpop.f32.mrf.mxu0
        %1232 = vdwg.mxu0
        %1233 = vst.msk [vmem:[%s306] sm:$0xff] %vm317, %v1230
        %1234 = vst.msk [vmem:[%s313] sm:$0xff] %vm771, %v783
        %s1235 = sand.u32 %s130, 1
        %s1236 = scalar_lea.sflag [#allocation4], %s1235
        %s1237 = sand.u32 %s130, 1
        %s1238 = smul.addr %s1237, 8
        %s1239 = scalar_lea.vmem [#allocation8], %s1238
        %s1240 = sand.u32 %s158, 1
        %s1241 = scalar_lea.sflag [#allocation10], %s1240
        %s1242 = sand.u32 %s158, 1
        %s1243 = smul.addr %s1242, 8
        %s1244 = scalar_lea.vmem [#allocation9], %s1243
        // Predicated region
        $region45: #{tpu_custom_call.1} parent=31 // pred_check
          %p1245 = pneg %p140
        $region46: #{tpu_custom_call.1} parent=31 // pred_check_branch
          %1247 = sbr.rel (%p1245) target = $region48
        $region47: #{tpu_custom_call.1} parent=31 // pred_region
          %s1249 = ssub.s32 128, 128
          %1250 = vsyncadd %s1236, %s1249
          %s1251 = sadd.s32 %s33, %s32
          %s1252 = smul.addr %s1251, 128
          %s1253 = scalar_lea.hbm %s3, %s1252
          %s1255 = sshll.u32 %s1239, 4
          %s1256 = int_to_ptr.vmem [resolvable:$true] %s1255
          %1258 = dma.vmem_to_hbm [thread:$0]  %s1256, 128, %s1253, %s1236
        $region48: #{tpu_custom_call.1} parent=31 // pred_fallthru
          _
        // Predicated region
        $region49: #{tpu_custom_call.1} parent=31 // pred_check
          %p1259 = pneg %p168
        $region50: #{tpu_custom_call.1} parent=31 // pred_check_branch
          %1261 = sbr.rel (%p1259) target = $region52
        $region51: #{tpu_custom_call.1} parent=31 // pred_region
          %s1263 = ssub.s32 128, 128
          %1264 = vsyncadd %s1241, %s1263
          %s1265 = sadd.s32 %s33, %s32
          %s1266 = smul.addr %s1265, 128
          %s1267 = scalar_lea.hbm %s4, %s1266
          %s1269 = sshll.u32 %s1244, 4
          %s1270 = int_to_ptr.vmem [resolvable:$true] %s1269
          %1272 = dma.vmem_to_hbm [thread:$0]  %s1270, 128, %s1267, %s1241
        $region52: #{tpu_custom_call.1} parent=31 // pred_fallthru
          _
      $region32: #{tpu_custom_call.1} parent=5 // pred_fallthru
        _
      %p1273 = scmp.le.s32.totalorder 2, %s23
      // Predicated region
      $region53: #{tpu_custom_call.1} parent=5 // pred_check
        %p1274 = pneg %p1273
      $region54: #{tpu_custom_call.1} parent=5 // pred_check_branch
        %1276 = sbr.rel (%p1274) target = $region56
      $region55: #{tpu_custom_call.1} parent=5 // pred_region
        %s1277 = ssub.s32 %s23, 2
        // Predicated region
        $region57: #{tpu_custom_call.1} parent=55 // pred_check
          %p1278 = pneg %p146
        $region58: #{tpu_custom_call.1} parent=55 // pred_check_branch
          %1280 = sbr.rel (%p1278) target = $region60
        $region59: #{tpu_custom_call.1} parent=55 // pred_region
          %s1281 = sand.u32 %s131, 1
          %s1282 = scalar_lea.sflag [#allocation4], %s1281
          %s1283 = sand.u32 %s131, 1
          %s1284 = smul.addr %s1283, 8
          %s1285 = scalar_lea.vmem [#allocation8], %s1284
          %1286 = dma.done %s1282, 128
        $region60: #{tpu_custom_call.1} parent=55 // pred_fallthru
          _
        // Predicated region
        $region61: #{tpu_custom_call.1} parent=55 // pred_check
          %p1287 = pneg %p174
        $region62: #{tpu_custom_call.1} parent=55 // pred_check_branch
          %1289 = sbr.rel (%p1287) target = $region64
        $region63: #{tpu_custom_call.1} parent=55 // pred_region
          %s1290 = sand.u32 %s159, 1
          %s1291 = scalar_lea.sflag [#allocation10], %s1290
          %s1292 = sand.u32 %s159, 1
          %s1293 = smul.addr %s1292, 8
          %s1294 = scalar_lea.vmem [#allocation9], %s1293
          %1295 = dma.done %s1291, 128
        $region64: #{tpu_custom_call.1} parent=55 // pred_fallthru
          _
      $region56: #{tpu_custom_call.1} parent=5 // pred_fallthru
        _
    $region6: #{tpu_custom_call.1} parent=1 // loop_footer
      %s27 = sadd.s32 1, %s23
    $region7: #{tpu_custom_call.1} parent=1 // loop_footer_branch
      %22 = sbr.rel target = $region3
    $region8: #{tpu_custom_call.1} parent=1 // loop_exit
      _
    %1296 = vsyncpa [#allocation3], 1
    %s1297 = scalar_lea.sflag [#allocation3], 1
    %1298 = vsyncpa %s1297, 1
    %1299 = vsyncpa [#allocation6], 1
    %s1300 = scalar_lea.sflag [#allocation6], 1
    %1301 = vsyncpa %s1300, 1
    %1302 = vsyncpa [#allocation4], 1
    %s1303 = scalar_lea.sflag [#allocation4], 1
    %1304 = vsyncpa %s1303, 1
    %1305 = vsyncpa [#allocation10], 1
    %s1306 = scalar_lea.sflag [#allocation10], 1
    %1307 = vsyncpa %s1306, 1

// kernel: tpu_custom_call.1
$region0: #{tpu_custom_call.1}
  #allocation0 [shape = 'u32[]', space=smem, size = 0x4, offset = 0x4, fixed_abs, tag = 'smem constant byte address 0x4 - core index']
  #allocation1 [shape = 'u32[144,128]{1,0:T(1,128)}', space=vmem, size = 0x12000, scoped, tag = 'internal scratch']
  %s0 = inlined_call_operand.hbm [shape: f32[2,8,32], index: 0, kind: input, shape index: {}]
  %s1 = inlined_call_operand.hbm [shape: f32[2,8,32], index: 1, kind: input, shape index: {}]
  %s2 = inlined_call_operand.hbm [shape: f32[2,8,32], index: 2, kind: input, shape index: {}]
  %s3 = inlined_call_operand.hbm [shape: f32[2,8,32], index: 3, kind: output, shape index: {0}]
  %s4 = inlined_call_operand.hbm [shape: f32[2,8,8], index: 4, kind: output, shape index: {1}]
  %5 = xla_tuple %s3, %s4
  %s6 = sld [smem:[#allocation0]]
  $region65: #{tpu_custom_call.1} parent=0
    _
  %s8 = ssub.s32 1, %s6
  %s9 = scalar_select 0, %s8, %s6
  $region1: #{tpu_custom_call.1} parent=0
    #allocation2 [shape = 'u8[8192]{0}', space=vmem, size = 0x2000, scoped, tag = 'input window, operand 0']
    #allocation3 [shape = 's32[2]{0}', space=sflag, size = 0x8, scoped, tag = 'scoped memory for tpu_custom_call.1']
    #allocation4 [shape = 's32[2]{0}', space=sflag, size = 0x8, scoped, tag = 'scoped memory for tpu_custom_call.1']
    #allocation5 [shape = 'u8[8192]{0}', space=vmem, size = 0x2000, scoped, tag = 'input window, operand 1']
    #allocation6 [shape = 's32[2]{0}', space=sflag, size = 0x8, scoped, tag = 'scoped memory for tpu_custom_call.1']
    #allocation7 [shape = 'u8[8192]{0}', space=vmem, size = 0x2000, scoped, tag = 'input window, operand 2']
    #allocation8 [shape = 'u8[8192]{0}', space=vmem, size = 0x2000, scoped, tag = 'output window, operand 0']
    #allocation9 [shape = 'u8[8192]{0}', space=vmem, size = 0x2000, scoped, tag = 'output window, operand 1']
    #allocation10 [shape = 's32[2]{0}', space=sflag, size = 0x8, scoped, tag = 'scoped memory for tpu_custom_call.1']
    %10 = vsyncpa [#allocation3], 0
    %s11 = scalar_lea.sflag [#allocation3], 1
    %12 = vsyncpa %s11, 0
    %13 = vsyncpa [#allocation6], 0
    %s14 = scalar_lea.sflag [#allocation6], 1
    %15 = vsyncpa %s14, 0
    %16 = vsyncpa [#allocation4], 0
    %s17 = scalar_lea.sflag [#allocation4], 1
    %18 = vsyncpa %s17, 0
    %19 = vsyncpa [#allocation10], 0
    %s20 = scalar_lea.sflag [#allocation10], 1
    %21 = vsyncpa %s20, 0
    loop: start=0, step=1, limit=4
    $region2: #{tpu_custom_call.1} parent=1 // loop_pre_header
      _
    $region3: #{tpu_custom_call.1} parent=1 // loop_header
      %s23 = sphi 0, %s27
      %p24 = scmp.ge.s32.totalorder %s23, 4
      %s30 = sphi 0, %s42
      %s31 = sphi 0, %s38
      %s32 = sphi 0, %s30
      %s33 = sphi 0, %s31
      %s34 = sphi 0, %s32
      %s35 = sphi 0, %s33
      %s47 = sphi 0, %s49
      %s50 = sphi 0, %s47
      %s51 = sphi 0, %s50
      %s67 = sphi 0, %s51
      %s73 = sphi 0, %s75
      %s76 = sphi 0, %s73
      %s77 = sphi 0, %s76
      %s93 = sphi 0, %s77
      %s99 = sphi 0, %s101
      %s102 = sphi 0, %s99
      %s103 = sphi 0, %s102
      %s119 = sphi 0, %s103
      %s127 = sphi 0, %s129
      %s130 = sphi 0, %s127
      %s131 = sphi 0, %s130
      %s147 = sphi 0, %s131
      %s155 = sphi 0, %s157
      %s158 = sphi 0, %s155
      %s159 = sphi 0, %s158
      %s175 = sphi 0, %s159
    $region4: #{tpu_custom_call.1} parent=1 // loop_header_branch
      %26 = sbr.rel (%p24) target = $region8
    $region5: #{tpu_custom_call.1} parent=1 // loop_body
      %s28 = ssub.s32 %s23, 1
      %s29 = ssub.s32 %s23, 2
      %s36 = sadd.s32 1, %s31
      %p37 = scmp.ge.s32.totalorder %s36, 1
      %s38 = scalar_select %p37, 0, %s36
      %s39 = sadd.s32 1, %s30
      %s40 = scalar_select %p37, %s39, %s30
      %p41 = scmp.ge.s32.totalorder %s40, 2
      %s42 = scalar_select %p41, 0, %s40
      %s43 = ssub.s32 %s30, %s42
      %s44 = ssub.s32 %s31, %s38
      %s45 = sor.u32 %s43, %s44
      %p46 = scmp.eq.s32.totalorder %s45, 0
      %s48 = sadd.s32 %s47, 1
      %s49 = scalar_select %p46, %s47, %s48
      %p52 = pneg %p46
      %p53 = scmp.eq.s32.totalorder %s23, 1
      %p54 = por %p52, %p53
      %p55 = scmp.ne.s32.totalorder %s47, %s50
      %p56 = scmp.eq.s32.totalorder %s23, 0
      %p57 = por %p55, %p56
      %p58 = scmp.ne.s32.totalorder %s47, %s50
      %p59 = scmp.eq.s32.totalorder %s28, 1
      %p60 = por %p58, %p59
      %p61 = scmp.ne.s32.totalorder %s50, %s51
      %p62 = scmp.eq.s32.totalorder %s28, 0
      %p63 = por %p61, %p62
      %p64 = scmp.ne.s32.totalorder %s50, %s51
      %p65 = scmp.eq.s32.totalorder %s29, 1
      %p66 = por %p64, %p65
      %p68 = scmp.ne.s32.totalorder %s51, %s67
      %p69 = scmp.eq.s32.totalorder %s29, 0
      %p70 = por %p68, %p69
      %s71 = ssub.s32 %s30, %s42
      %p72 = scmp.eq.s32.totalorder %s71, 0
      %s74 = sadd.s32 %s73, 1
      %s75 = scalar_select %p72, %s73, %s74
      %p78 = pneg %p72
      %p79 = scmp.eq.s32.totalorder %s23, 1
      %p80 = por %p78, %p79
      %p81 = scmp.ne.s32.totalorder %s73, %s76
      %p82 = scmp.eq.s32.totalorder %s23, 0
      %p83 = por %p81, %p82
      %p84 = scmp.ne.s32.totalorder %s73, %s76
      %p85 = scmp.eq.s32.totalorder %s28, 1
      %p86 = por %p84, %p85
      %p87 = scmp.ne.s32.totalorder %s76, %s77
      %p88 = scmp.eq.s32.totalorder %s28, 0
      %p89 = por %p87, %p88
      %p90 = scmp.ne.s32.totalorder %s76, %s77
      %p91 = scmp.eq.s32.totalorder %s29, 1
      %p92 = por %p90, %p91
      %p94 = scmp.ne.s32.totalorder %s77, %s93
      %p95 = scmp.eq.s32.totalorder %s29, 0
      %p96 = por %p94, %p95
      %s97 = ssub.s32 %s30, %s42
      %p98 = scmp.eq.s32.totalorder %s97, 0
      %s100 = sadd.s32 %s99, 1
      %s101 = scalar_select %p98, %s99, %s100
      %p104 = pneg %p98
      %p105 = scmp.eq.s32.totalorder %s23, 1
      %p106 = por %p104, %p105
      %p107 = scmp.ne.s32.totalorder %s99, %s102
      %p108 = scmp.eq.s32.totalorder %s23, 0
      %p109 = por %p107, %p108
      %p110 = scmp.ne.s32.totalorder %s99, %s102
      %p111 = scmp.eq.s32.totalorder %s28, 1
      %p112 = por %p110, %p111
      %p113 = scmp.ne.s32.totalorder %s102, %s103
      %p114 = scmp.eq.s32.totalorder %s28, 0
      %p115 = por %p113, %p114
      %p116 = scmp.ne.s32.totalorder %s102, %s103
      %p117 = scmp.eq.s32.totalorder %s29, 1
      %p118 = por %p116, %p117
      %p120 = scmp.ne.s32.totalorder %s103, %s119
      %p121 = scmp.eq.s32.totalorder %s29, 0
      %p122 = por %p120, %p121
      %s123 = ssub.s32 %s30, %s42
      %s124 = ssub.s32 %s31, %s38
      %s125 = sor.u32 %s123, %s124
      %p126 = scmp.eq.s32.totalorder %s125, 0
      %s128 = sadd.s32 %s127, 1
      %s129 = scalar_select %p126, %s127, %s128
      %p132 = pneg %p126
      %p133 = scmp.eq.s32.totalorder %s23, 1
      %p134 = por %p132, %p133
      %p135 = scmp.ne.s32.totalorder %s127, %s130
      %p136 = scmp.eq.s32.totalorder %s23, 0
      %p137 = por %p135, %p136
      %p138 = scmp.ne.s32.totalorder %s127, %s130
      %p139 = scmp.eq.s32.totalorder %s28, 1
      %p140 = por %p138, %p139
      %p141 = scmp.ne.s32.totalorder %s130, %s131
      %p142 = scmp.eq.s32.totalorder %s28, 0
      %p143 = por %p141, %p142
      %p144 = scmp.ne.s32.totalorder %s130, %s131
      %p145 = scmp.eq.s32.totalorder %s29, 1
      %p146 = por %p144, %p145
      %p148 = scmp.ne.s32.totalorder %s131, %s147
      %p149 = scmp.eq.s32.totalorder %s29, 0
      %p150 = por %p148, %p149
      %s151 = ssub.s32 %s30, %s42
      %s152 = ssub.s32 %s31, %s38
      %s153 = sor.u32 %s151, %s152
      %p154 = scmp.eq.s32.totalorder %s153, 0
      %s156 = sadd.s32 %s155, 1
      %s157 = scalar_select %p154, %s155, %s156
      %p160 = pneg %p154
      %p161 = scmp.eq.s32.totalorder %s23, 1
      %p162 = por %p160, %p161
      %p163 = scmp.ne.s32.totalorder %s155, %s158
      %p164 = scmp.eq.s32.totalorder %s23, 0
      %p165 = por %p163, %p164
      %p166 = scmp.ne.s32.totalorder %s155, %s158
      %p167 = scmp.eq.s32.totalorder %s28, 1
      %p168 = por %p166, %p167
      %p169 = scmp.ne.s32.totalorder %s158, %s159
      %p170 = scmp.eq.s32.totalorder %s28, 0
      %p171 = por %p169, %p170
      %p172 = scmp.ne.s32.totalorder %s158, %s159
      %p173 = scmp.eq.s32.totalorder %s29, 1
      %p174 = por %p172, %p173
      %p176 = scmp.ne.s32.totalorder %s159, %s175
      %p177 = scmp.eq.s32.totalorder %s29, 0
      %p178 = por %p176, %p177
      %p179 = scmp.le.s32.totalorder 1, %s23
      %p180 = scmp.lt.s32.totalorder %s23, 3
      %p181 = pnand %p179, %p180
      %p182 = pneg %p181
      // Predicated region
      $region9: #{tpu_custom_call.1} parent=5 // pred_check
        _
      $region10: #{tpu_custom_call.1} parent=5 // pred_check_branch
        %184 = sbr.rel (%p181) target = $region12
      $region11: #{tpu_custom_call.1} parent=5 // pred_region
        %s185 = ssub.s32 %s23, 1
      $region12: #{tpu_custom_call.1} parent=5 // pred_fallthru
        _
      %p186 = scmp.lt.s32.totalorder %s23, 2
      // Predicated region
      $region13: #{tpu_custom_call.1} parent=5 // pred_check
        %p187 = pneg %p186
      $region14: #{tpu_custom_call.1} parent=5 // pred_check_branch
        %189 = sbr.rel (%p187) target = $region16
      $region15: #{tpu_custom_call.1} parent=5 // pred_region
        // Predicated region
        $region17: #{tpu_custom_call.1} parent=15 // pred_check
          %p190 = pneg %p57
        $region18: #{tpu_custom_call.1} parent=15 // pred_check_branch
          %192 = sbr.rel (%p190) target = $region20
        $region19: #{tpu_custom_call.1} parent=15 // pred_region
          %s193 = sand.u32 %s47, 1
          %s194 = scalar_lea.sflag [#allocation3], %s193
          %s195 = sand.u32 %s47, 1
          %s196 = smul.addr %s195, 8
          %s197 = scalar_lea.vmem [#allocation2], %s196
          %s199 = ssub.s32 128, 128
          %200 = vsyncadd %s194, %s199
          %s201 = sadd.s32 %s31, %s30
          %s202 = smul.addr %s201, 128
          %s203 = scalar_lea.hbm %s0, %s202
          %s205 = sshll.u32 %s197, 4
          %s206 = int_to_ptr.vmem [resolvable:$true] %s205
          %208 = dma.hbm_to_vmem [thread:$0]  %s203, 128, %s206, %s194
        $region20: #{tpu_custom_call.1} parent=15 // pred_fallthru
          _
        // Predicated region
        $region21: #{tpu_custom_call.1} parent=15 // pred_check
          %p209 = pneg %p83
        $region22: #{tpu_custom_call.1} parent=15 // pred_check_branch
          %211 = sbr.rel (%p209) target = $region24
        $region23: #{tpu_custom_call.1} parent=15 // pred_region
          %s212 = sand.u32 %s23, 1
          %s213 = scalar_lea.sflag [#allocation6], %s212
          %s214 = sand.u32 %s73, 1
          %s215 = smul.addr %s214, 8
          %s216 = scalar_lea.vmem [#allocation5], %s215
          %s218 = ssub.s32 128, 128
          %219 = vsyncadd %s213, %s218
          %s220 = smul.addr %s30, 128
          %s221 = scalar_lea.hbm %s1, %s220
          %s223 = sshll.u32 %s216, 4
          %s224 = int_to_ptr.vmem [resolvable:$true] %s223
          %226 = dma.hbm_to_vmem [thread:$0]  %s221, 128, %s224, %s213
        $region24: #{tpu_custom_call.1} parent=15 // pred_fallthru
          _
        // Predicated region
        $region25: #{tpu_custom_call.1} parent=15 // pred_check
          %p227 = pneg %p109
        $region26: #{tpu_custom_call.1} parent=15 // pred_check_branch
          %229 = sbr.rel (%p227) target = $region28
        $region27: #{tpu_custom_call.1} parent=15 // pred_region
          %s230 = sand.u32 %s23, 1
          %s231 = scalar_lea.sflag [#allocation6], %s230
          %s232 = sand.u32 %s99, 1
          %s233 = smul.addr %s232, 8
          %s234 = scalar_lea.vmem [#allocation7], %s233
          %s236 = ssub.s32 128, 128
          %237 = vsyncadd %s231, %s236
          %s238 = smul.addr %s30, 128
          %s239 = scalar_lea.hbm %s2, %s238
          %s241 = sshll.u32 %s234, 4
          %s242 = int_to_ptr.vmem [resolvable:$true] %s241
          %244 = dma.hbm_to_vmem [thread:$0]  %s239, 128, %s242, %s231
        $region28: #{tpu_custom_call.1} parent=15 // pred_fallthru
          _
      $region16: #{tpu_custom_call.1} parent=5 // pred_fallthru
        _
      %p245 = scmp.le.s32.totalorder 1, %s23
      %p246 = scmp.lt.s32.totalorder %s23, 3
      %p247 = pnand %p245, %p246
      %p248 = pneg %p247
      // Predicated region
      $region29: #{tpu_custom_call.1} parent=5 // pred_check
        _
      $region30: #{tpu_custom_call.1} parent=5 // pred_check_branch
        %250 = sbr.rel (%p247) target = $region32
      $region31: #{tpu_custom_call.1} parent=5 // pred_region
        %s251 = ssub.s32 %s23, 1
        %s252 = sand.u32 %s50, 1
        %s253 = scalar_lea.sflag [#allocation3], %s252
        %s254 = sand.u32 %s50, 1
        %s255 = smul.addr %s254, 8
        %s256 = scalar_lea.vmem [#allocation2], %s255
        // Predicated region
        $region33: #{tpu_custom_call.1} parent=31 // pred_check
          %p257 = pneg %p63
        $region34: #{tpu_custom_call.1} parent=31 // pred_check_branch
          %259 = sbr.rel (%p257) target = $region36
        $region35: #{tpu_custom_call.1} parent=31 // pred_region
          %260 = dma.done %s253, 128
        $region36: #{tpu_custom_call.1} parent=31 // pred_fallthru
          _
        %s261 = sand.u32 %s28, 1
        %s262 = scalar_lea.sflag [#allocation6], %s261
        %s263 = sand.u32 %s76, 1
        %s264 = smul.addr %s263, 8
        %s265 = scalar_lea.vmem [#allocation5], %s264
        // Predicated region
        $region37: #{tpu_custom_call.1} parent=31 // pred_check
          %p266 = pneg %p89
        $region38: #{tpu_custom_call.1} parent=31 // pred_check_branch
          %268 = sbr.rel (%p266) target = $region40
        $region39: #{tpu_custom_call.1} parent=31 // pred_region
          %269 = dma.done %s262, 128
        $region40: #{tpu_custom_call.1} parent=31 // pred_fallthru
          _
        %s270 = sand.u32 %s28, 1
        %s271 = scalar_lea.sflag [#allocation6], %s270
        %s272 = sand.u32 %s102, 1
        %s273 = smul.addr %s272, 8
        %s274 = scalar_lea.vmem [#allocation7], %s273
        // Predicated region
        $region41: #{tpu_custom_call.1} parent=31 // pred_check
          %p275 = pneg %p115
        $region42: #{tpu_custom_call.1} parent=31 // pred_check_branch
          %277 = sbr.rel (%p275) target = $region44
        $region43: #{tpu_custom_call.1} parent=31 // pred_region
          %278 = dma.done %s271, 128
        $region44: #{tpu_custom_call.1} parent=31 // pred_fallthru
          _
        %s279 = sand.u32 %s50, 1
        %s280 = scalar_lea.sflag [#allocation3], %s279
        %s281 = sand.u32 %s50, 1
        %s282 = smul.addr %s281, 8
        %s283 = scalar_lea.vmem [#allocation2], %s282
        %p284 = pneg %p63
        %p285 = pneg %p60
        %s286 = sand.u32 %s28, 1
        %s287 = scalar_lea.sflag [#allocation6], %s286
        %s288 = sand.u32 %s76, 1
        %s289 = smul.addr %s288, 8
        %s290 = scalar_lea.vmem [#allocation5], %s289
        %p291 = pneg %p89
        %p292 = pneg %p86
        %s293 = sand.u32 %s28, 1
        %s294 = scalar_lea.sflag [#allocation6], %s293
        %s295 = sand.u32 %s102, 1
        %s296 = smul.addr %s295, 8
        %s297 = scalar_lea.vmem [#allocation7], %s296
        %p298 = pneg %p115
        %p299 = pneg %p112
        %p300 = pneg %p143
        %p301 = pneg %p140
        %s302 = sand.u32 %s130, 1
        %s303 = scalar_lea.sflag [#allocation4], %s302
        %s304 = sand.u32 %s130, 1
        %s305 = smul.addr %s304, 8
        %s306 = scalar_lea.vmem [#allocation8], %s305
        %p307 = pneg %p171
        %p308 = pneg %p168
        %s309 = sand.u32 %s158, 1
        %s310 = scalar_lea.sflag [#allocation10], %s309
        %s311 = sand.u32 %s158, 1
        %s312 = smul.addr %s311, 8
        %s313 = scalar_lea.vmem [#allocation9], %s312
        %v314 = vld [vmem:[%s256] sm:$0xff]
        %v315 = vld [vmem:[%s265] sm:$0xff]
        %v316 = vld [vmem:[%s274] sm:$0xff]
        %vm317 = vcmask 261120
        %v319 = vsel %vm317, %v314, 0
        %v322 = vsel %vm317, %v315, 0
        %324 = vmatprep.subr.mxu0 0.0
        %325 = vmatpush1.xpose.msra.mxu0 0.0
        %326 = vmatprep.subr.mxu0 0.0
        %327 = vmatpush1.xpose.msra.mxu0 0.0
        %328 = vmatprep.subr.mxu0 0.0
        %329 = vmatpush1.xpose.msra.mxu0 0.0
        %330 = vmatprep.subr.mxu0 0.0
        %331 = vmatpush1.xpose.msra.mxu0 0.0
        %332 = vmatprep.subr.mxu0 0.0
        %333 = vmatpush1.xpose.msra.mxu0 0.0
        %334 = vmatprep.subr.mxu0 0.0
        %335 = vmatpush1.xpose.msra.mxu0 0.0
        %336 = vmatprep.subr.mxu0 0.0
        %337 = vmatpush1.xpose.msra.mxu0 0.0
        %338 = vmatprep.subr.mxu0 0.0
        %339 = vmatpush1.xpose.msra.mxu0 0.0
        %340 = vmatprep.subr.mxu0 0.0
        %341 = vmatpush1.xpose.msra.mxu0 0.0
        %342 = vmatprep.subr.mxu0 0.0
        %343 = vmatpush1.xpose.msra.mxu0 0.0
        %344 = vmatprep.subr.mxu0 0.0
        %345 = vmatpush1.xpose.msra.mxu0 0.0
        %346 = vmatprep.subr.mxu0 0.0
        %347 = vmatpush1.xpose.msra.mxu0 0.0
        %348 = vmatprep.subr.mxu0 0.0
        %349 = vmatpush1.xpose.msra.mxu0 0.0
        %350 = vmatprep.subr.mxu0 0.0
        %351 = vmatpush1.xpose.msra.mxu0 0.0
        %352 = vmatprep.subr.mxu0 0.0
        %353 = vmatpush1.xpose.msra.mxu0 0.0
        %354 = vmatprep.subr.mxu0 0.0
        %355 = vmatpush1.xpose.msra.mxu0 %v322
        %356 = vmatprep.subr.mxu0 0.0
        %357 = vmatpush2.xpose.msra.mxu0 0.0
        %358 = vmatprep.subr.mxu0 0.0
        %359 = vmatpush2.xpose.msra.mxu0 0.0
        %360 = vmatprep.subr.mxu0 0.0
        %361 = vmatpush2.xpose.msra.mxu0 0.0
        %362 = vmatprep.subr.mxu0 0.0
        %363 = vmatpush2.xpose.msra.mxu0 0.0
        %364 = vmatprep.subr.mxu0 0.0
        %365 = vmatpush2.xpose.msra.mxu0 0.0
        %366 = vmatprep.subr.mxu0 0.0
        %367 = vmatpush2.xpose.msra.mxu0 0.0
        %368 = vmatprep.subr.mxu0 0.0
        %369 = vmatpush2.xpose.msra.mxu0 0.0
        %370 = vmatprep.subr.mxu0 0.0
        %371 = vmatpush2.xpose.msra.mxu0 0.0
        %372 = vmatprep.subr.mxu0 0.0
        %373 = vmatpush2.xpose.msra.mxu0 0.0
        %374 = vmatprep.subr.mxu0 0.0
        %375 = vmatpush2.xpose.msra.mxu0 0.0
        %376 = vmatprep.subr.mxu0 0.0
        %377 = vmatpush2.xpose.msra.mxu0 0.0
        %378 = vmatprep.subr.mxu0 0.0
        %379 = vmatpush2.xpose.msra.mxu0 0.0
        %380 = vmatprep.subr.mxu0 0.0
        %381 = vmatpush2.xpose.msra.mxu0 0.0
        %382 = vmatprep.subr.mxu0 0.0
        %383 = vmatpush2.xpose.msra.mxu0 0.0
        %384 = vmatprep.subr.mxu0 0.0
        %385 = vmatpush2.xpose.msra.mxu0 0.0
        %386 = vmatprep.subr.mxu0 0.0
        %387 = vmatpush2.xpose.msra.mxu0 0.0
        %388 = vmatprep.mubr.f32.mxu0 0.0
        %389 = vmatmul.mubr.f32.gmra.mxu0 %v319
        %v390 = vpop.f32.mrf.mxu0
        %v391 = vadd.f32 0.0, %v390
        %v392 = vpop.f32.mrf.mxu0
        %393 = vdwg.mxu0
        %v394 = vmul.f32 %v391, 0.17677669
        %vm395 = vcmask 64512
        %v396 = vsel %vm395, %v394, -inf
        %397 = vmax.xlane.f32.xlu0 %v396
        %v398 = vpop.xlane.xlu0 %397
        %v399 = vsub.f32 %v394, %v398
        %v400 = vmul.f32 %v399, 1.442695
        %v401 = vpow.pop %v400
        %v402 = vsel %vm395, %v401, 0.0
        %403 = vadd.xlane.f32.xlu0 %v402
        %v404 = vpop.xlane.xlu0 %403
        %v405 = vrcp.pop %v404
        %v406 = vmul.f32 1.0, %v405
        %v407 = vmul.f32 %v401, %v406
        %v409 = vsel %vm395, %v407, 0
        %411 = vmatprep.subr.mxu0 0.0
        %412 = vmatpush1.msra.mxu0 0.0
        %413 = vmatprep.subr.mxu0 0.0
        %414 = vmatpush1.msra.mxu0 0.0
        %415 = vmatprep.subr.mxu0 0.0
        %416 = vmatpush1.msra.mxu0 0.0
        %417 = vmatprep.subr.mxu0 0.0
        %418 = vmatpush1.msra.mxu0 0.0
        %419 = vmatprep.subr.mxu0 0.0
        %420 = vmatpush1.msra.mxu0 0.0
        %421 = vmatprep.subr.mxu0 0.0
        %422 = vmatpush1.msra.mxu0 0.0
        %423 = vmatprep.subr.mxu0 0.0
        %424 = vmatpush1.msra.mxu0 0.0
        %425 = vmatprep.subr.mxu0 0.0
        %426 = vmatpush1.msra.mxu0 0.0
        %427 = vmatprep.subr.mxu0 0.0
        %428 = vmatpush1.msra.mxu0 0.0
        %429 = vmatprep.subr.mxu0 0.0
        %430 = vmatpush1.msra.mxu0 0.0
        %431 = vmatprep.subr.mxu0 0.0
        %432 = vmatpush1.msra.mxu0 0.0
        %433 = vmatprep.subr.mxu0 0.0
        %434 = vmatpush1.msra.mxu0 0.0
        %435 = vmatprep.subr.mxu0 0.0
        %436 = vmatpush1.msra.mxu0 0.0
        %437 = vmatprep.subr.mxu0 0.0
        %438 = vmatpush1.msra.mxu0 0.0
        %439 = vmatprep.subr.mxu0 0.0
        %440 = vmatpush1.msra.mxu0 0.0
        %441 = vmatprep.subr.mxu0 0.0
        %442 = vmatpush1.msra.mxu0 %v316
        %443 = vmatprep.subr.mxu0 0.0
        %444 = vmatpush2.msra.mxu0 0.0
        %445 = vmatprep.subr.mxu0 0.0
        %446 = vmatpush2.msra.mxu0 0.0
        %447 = vmatprep.subr.mxu0 0.0
        %448 = vmatpush2.msra.mxu0 0.0
        %449 = vmatprep.subr.mxu0 0.0
        %450 = vmatpush2.msra.mxu0 0.0
        %451 = vmatprep.subr.mxu0 0.0
        %452 = vmatpush2.msra.mxu0 0.0
        %453 = vmatprep.subr.mxu0 0.0
        %454 = vmatpush2.msra.mxu0 0.0
        %455 = vmatprep.subr.mxu0 0.0
        %456 = vmatpush2.msra.mxu0 0.0
        %457 = vmatprep.subr.mxu0 0.0
        %458 = vmatpush2.msra.mxu0 0.0
        %459 = vmatprep.subr.mxu0 0.0
        %460 = vmatpush2.msra.mxu0 0.0
        %461 = vmatprep.subr.mxu0 0.0
        %462 = vmatpush2.msra.mxu0 0.0
        %463 = vmatprep.subr.mxu0 0.0
        %464 = vmatpush2.msra.mxu0 0.0
        %465 = vmatprep.subr.mxu0 0.0
        %466 = vmatpush2.msra.mxu0 0.0
        %467 = vmatprep.subr.mxu0 0.0
        %468 = vmatpush2.msra.mxu0 0.0
        %469 = vmatprep.subr.mxu0 0.0
        %470 = vmatpush2.msra.mxu0 0.0
        %471 = vmatprep.subr.mxu0 0.0
        %472 = vmatpush2.msra.mxu0 0.0
        %473 = vmatprep.subr.mxu0 0.0
        %474 = vmatpush2.msra.mxu0 0.0
        %475 = vmatprep.mubr.f32.mxu0 0.0
        %476 = vmatmul.mubr.f32.gmra.mxu0 %v409
        %v477 = vpop.f32.mrf.mxu0
        %v478 = vadd.f32 0.0, %v477
        %v479 = vpop.f32.mrf.mxu0
        %480 = vdwg.mxu0
        %481 = vst.msk [vmem:[%s306] sm:$0xff] %vm317, %v478
        %482 = vst.msk [vmem:[%s313] sm:$0xff] %vm395, %v407
        %s483 = sand.u32 %s130, 1
        %s484 = scalar_lea.sflag [#allocation4], %s483
        %s485 = sand.u32 %s130, 1
        %s486 = smul.addr %s485, 8
        %s487 = scalar_lea.vmem [#allocation8], %s486
        %s488 = sand.u32 %s158, 1
        %s489 = scalar_lea.sflag [#allocation10], %s488
        %s490 = sand.u32 %s158, 1
        %s491 = smul.addr %s490, 8
        %s492 = scalar_lea.vmem [#allocation9], %s491
        // Predicated region
        $region45: #{tpu_custom_call.1} parent=31 // pred_check
          %p493 = pneg %p140
        $region46: #{tpu_custom_call.1} parent=31 // pred_check_branch
          %495 = sbr.rel (%p493) target = $region48
        $region47: #{tpu_custom_call.1} parent=31 // pred_region
          %s497 = ssub.s32 128, 128
          %498 = vsyncadd %s484, %s497
          %s499 = sadd.s32 %s33, %s32
          %s500 = smul.addr %s499, 128
          %s501 = scalar_lea.hbm %s3, %s500
          %s503 = sshll.u32 %s487, 4
          %s504 = int_to_ptr.vmem [resolvable:$true] %s503
          %506 = dma.vmem_to_hbm [thread:$0]  %s504, 128, %s501, %s484
        $region48: #{tpu_custom_call.1} parent=31 // pred_fallthru
          _
        // Predicated region
        $region49: #{tpu_custom_call.1} parent=31 // pred_check
          %p507 = pneg %p168
        $region50: #{tpu_custom_call.1} parent=31 // pred_check_branch
          %509 = sbr.rel (%p507) target = $region52
        $region51: #{tpu_custom_call.1} parent=31 // pred_region
          %s511 = ssub.s32 128, 128
          %512 = vsyncadd %s489, %s511
          %s513 = sadd.s32 %s33, %s32
          %s514 = smul.addr %s513, 128
          %s515 = scalar_lea.hbm %s4, %s514
          %s517 = sshll.u32 %s492, 4
          %s518 = int_to_ptr.vmem [resolvable:$true] %s517
          %520 = dma.vmem_to_hbm [thread:$0]  %s518, 128, %s515, %s489
        $region52: #{tpu_custom_call.1} parent=31 // pred_fallthru
          _
      $region32: #{tpu_custom_call.1} parent=5 // pred_fallthru
        _
      %p521 = scmp.le.s32.totalorder 2, %s23
      // Predicated region
      $region53: #{tpu_custom_call.1} parent=5 // pred_check
        %p522 = pneg %p521
      $region54: #{tpu_custom_call.1} parent=5 // pred_check_branch
        %524 = sbr.rel (%p522) target = $region56
      $region55: #{tpu_custom_call.1} parent=5 // pred_region
        %s525 = ssub.s32 %s23, 2
        // Predicated region
        $region57: #{tpu_custom_call.1} parent=55 // pred_check
          %p526 = pneg %p146
        $region58: #{tpu_custom_call.1} parent=55 // pred_check_branch
          %528 = sbr.rel (%p526) target = $region60
        $region59: #{tpu_custom_call.1} parent=55 // pred_region
          %s529 = sand.u32 %s131, 1
          %s530 = scalar_lea.sflag [#allocation4], %s529
          %s531 = sand.u32 %s131, 1
          %s532 = smul.addr %s531, 8
          %s533 = scalar_lea.vmem [#allocation8], %s532
          %534 = dma.done %s530, 128
        $region60: #{tpu_custom_call.1} parent=55 // pred_fallthru
          _
        // Predicated region
        $region61: #{tpu_custom_call.1} parent=55 // pred_check
          %p535 = pneg %p174
        $region62: #{tpu_custom_call.1} parent=55 // pred_check_branch
          %537 = sbr.rel (%p535) target = $region64
        $region63: #{tpu_custom_call.1} parent=55 // pred_region
          %s538 = sand.u32 %s159, 1
          %s539 = scalar_lea.sflag [#allocation10], %s538
          %s540 = sand.u32 %s159, 1
          %s541 = smul.addr %s540, 8
          %s542 = scalar_lea.vmem [#allocation9], %s541
          %543 = dma.done %s539, 128
        $region64: #{tpu_custom_call.1} parent=55 // pred_fallthru
          _
      $region56: #{tpu_custom_call.1} parent=5 // pred_fallthru
        _
    $region6: #{tpu_custom_call.1} parent=1 // loop_footer
      %s27 = sadd.s32 1, %s23
    $region7: #{tpu_custom_call.1} parent=1 // loop_footer_branch
      %22 = sbr.rel target = $region3
    $region8: #{tpu_custom_call.1} parent=1 // loop_exit
      _
    %544 = vsyncpa [#allocation3], 1
    %s545 = scalar_lea.sflag [#allocation3], 1
    %546 = vsyncpa %s545, 1
    %547 = vsyncpa [#allocation6], 1
    %s548 = scalar_lea.sflag [#allocation6], 1
    %549 = vsyncpa %s548, 1
    %550 = vsyncpa [#allocation4], 1
    %s551 = scalar_lea.sflag [#allocation4], 1
    %552 = vsyncpa %s551, 1
    %553 = vsyncpa [#allocation10], 1
    %s554 = scalar_lea.sflag [#allocation10], 1
    %555 = vsyncpa %s554, 1

</llo_original>
